<compile_context>
chip_gen: v5e
topology: v5e:2x2
jax: 0.10.0
libtpu: 0.0.40
codegen_flags: <defaults>
</compile_context>

<pallas_src>
import functools

import jax
import jax.numpy as jnp
from jax.experimental import pallas as pl
from jax.experimental.pallas import tpu as pltpu

# ----------------------------- model config (small, BERT-shaped) ------------
VOCAB = 128
HIDDEN = 32
N_LAYERS = 2
N_HEADS = 2
HEAD_DIM = HIDDEN // N_HEADS
INTERMEDIATE = 64
MAX_POS = 16
TYPE_VOCAB = 2
LN_EPS = 1e-12

BATCH = 2
SEQ = 8


# ----------------------------- in-kernel helpers -----------------------------
def _gelu(x):
    # TODO(synk): HF BERT uses exact erf-based GELU; tanh approximation used
    # here for guaranteed TPU EUP lowering.
    c = 0.7978845608028654  # sqrt(2/pi)
    return 0.5 * x * (1.0 + jnp.tanh(c * (x + 0.044715 * x * x * x)))


def _layernorm(x, g, b, eps):
    mu = jnp.mean(x, axis=-1, keepdims=True)
    xc = x - mu
    var = jnp.mean(xc * xc, axis=-1, keepdims=True)
    return xc * jax.lax.rsqrt(var + eps) * g + b


def _fullspec(shape):
    return pl.BlockSpec(shape, lambda i, _n=len(shape): (0,) * _n)


# ----------------------------- embedding LayerNorm kernel --------------------
def _emb_ln_kernel(e_ref, g_ref, b_ref, o_ref, *, eps):
    o_ref[...] = _layernorm(e_ref[...], g_ref[...], b_ref[...], eps)


def embed_layernorm(emb, g, b, eps=LN_EPS):
    M, H = emb.shape
    return pl.pallas_call(
        functools.partial(_emb_ln_kernel, eps=eps),
        grid=(1,),
        out_shape=jax.ShapeDtypeStruct((M, H), jnp.float32),
        in_specs=[_fullspec((M, H)), _fullspec((1, H)), _fullspec((1, H))],
        out_specs=_fullspec((M, H)),
    )(emb, g.reshape(1, H), b.reshape(1, H))


# ----------------------------- fused encoder layer kernel --------------------
def _encoder_layer_kernel(x_ref, mask_ref, qkvw_ref, qkvb_ref, ow_ref, ob_ref,
                          aln_g_ref, aln_b_ref, iw_ref, ib_ref, fw_ref, fb_ref,
                          fln_g_ref, fln_b_ref, o_ref, ctx_ref, *,
                          batch, seq, n_heads, head_dim, scale, eps):
    x = x_ref[...]                                            # (B*S, H)

    # Fused Q/K/V projection: one MXU push instead of three.
    qkv = jnp.dot(x, qkvw_ref[...],
                  preferred_element_type=jnp.float32) + qkvb_ref[...]
    hidden = n_heads * head_dim

    # Per (batch, head) attention; tiny static loop, everything stays in vregs.
    for b in range(batch):
        r0 = b * seq
        mask_b = mask_ref[pl.ds(b, 1), :]                     # (1, S) additive
        for h in range(n_heads):
            c0 = h * head_dim
            q_bh = qkv[r0:r0 + seq, c0:c0 + head_dim]                    # (S,D)
            k_bh = qkv[r0:r0 + seq, hidden + c0:hidden + c0 + head_dim]
            v_bh = qkv[r0:r0 + seq, 2 * hidden + c0:2 * hidden + c0 + head_dim]

            s = jnp.dot(q_bh, k_bh.T,
                        preferred_element_type=jnp.float32) * scale
            s = s + mask_b                                    # broadcast rows
            s = s - jnp.max(s, axis=-1, keepdims=True)
            p = jnp.exp(s)
            inv = pl.reciprocal(jnp.sum(p, axis=-1, keepdims=True), approx=True)
            p = p * inv
            ctx_ref[pl.ds(r0, seq), pl.ds(c0, head_dim)] = jnp.dot(
                p, v_bh, preferred_element_type=jnp.float32)

    ctx = ctx_ref[...]                                        # (B*S, H)

    # Output projection + residual + LayerNorm.
    attn_out = jnp.dot(ctx, ow_ref[...],
                       preferred_element_type=jnp.float32) + ob_ref[...]
    x1 = _layernorm(attn_out + x, aln_g_ref[...], aln_b_ref[...], eps)

    # FFN with fused GELU + residual + LayerNorm.
    hid = _gelu(jnp.dot(x1, iw_ref[...],
                        preferred_element_type=jnp.float32) + ib_ref[...])
    ffn = jnp.dot(hid, fw_ref[...],
                  preferred_element_type=jnp.float32) + fb_ref[...]
    o_ref[...] = _layernorm(ffn + x1, fln_g_ref[...], fln_b_ref[...], eps)


def encoder_layer(x, mask_add, layer):
    """x: (B*S, H); mask_add: (B, S) additive mask -> new x (B*S, H)."""
    M, H = x.shape
    B, S = mask_add.shape
    kernel = functools.partial(
        _encoder_layer_kernel, batch=B, seq=S, n_heads=N_HEADS,
        head_dim=HEAD_DIM, scale=1.0 / (HEAD_DIM ** 0.5), eps=LN_EPS)

    return pl.pallas_call(
        kernel,
        grid=(1,),
        out_shape=jax.ShapeDtypeStruct((M, H), jnp.float32),
        in_specs=[
            _fullspec((M, H)),                      # x (residual)
            _fullspec((B, S)),                      # additive attention mask
            _fullspec((H, 3 * H)),                  # fused qkv weight
            _fullspec((1, 3 * H)),                  # fused qkv bias
            _fullspec((H, H)),                      # output proj weight
            _fullspec((1, H)),                      # output proj bias
            _fullspec((1, H)), _fullspec((1, H)),   # attn LN gamma / beta
            _fullspec((H, INTERMEDIATE)),           # ffn in weight
            _fullspec((1, INTERMEDIATE)),           # ffn in bias
            _fullspec((INTERMEDIATE, H)),           # ffn out weight
            _fullspec((1, H)),                      # ffn out bias
            _fullspec((1, H)), _fullspec((1, H)),   # ffn LN gamma / beta
        ],
        out_specs=_fullspec((M, H)),
        scratch_shapes=[pltpu.VMEM((M, H), jnp.float32)],   # attention context
        input_output_aliases={0: 0},                        # reuse x's HBM buf
        compiler_params=pltpu.CompilerParams(
            dimension_semantics=("arbitrary",)),
    )(x, mask_add,
      layer["qkv_w"], layer["qkv_b"].reshape(1, 3 * H),
      layer["o_w"], layer["o_b"].reshape(1, H),
      layer["attn_ln_g"].reshape(1, H), layer["attn_ln_b"].reshape(1, H),
      layer["i_w"], layer["i_b"].reshape(1, INTERMEDIATE),
      layer["f_w"], layer["f_b"].reshape(1, H),
      layer["ffn_ln_g"].reshape(1, H), layer["ffn_ln_b"].reshape(1, H))


# ----------------------------- fused MLM head kernel --------------------------
def _mlm_head_kernel(x_ref, trw_ref, trb_ref, g_ref, b_ref, decw_ref, decb_ref,
                     o_ref, *, eps):
    h = jnp.dot(x_ref[...], trw_ref[...],
                preferred_element_type=jnp.float32) + trb_ref[...]
    h = _gelu(h)
    h = _layernorm(h, g_ref[...], b_ref[...], eps)
    o_ref[...] = jnp.dot(h, decw_ref[...],
                         preferred_element_type=jnp.float32) + decb_ref[...]


def mlm_head(x, tr_w, tr_b, ln_g, ln_b, dec_w_t, dec_b, eps=LN_EPS):
    M, H = x.shape
    V = dec_w_t.shape[1]
    return pl.pallas_call(
        functools.partial(_mlm_head_kernel, eps=eps),
        grid=(1,),
        out_shape=jax.ShapeDtypeStruct((M, V), jnp.float32),
        in_specs=[_fullspec((M, H)), _fullspec((H, H)), _fullspec((1, H)),
                  _fullspec((1, H)), _fullspec((1, H)),
                  _fullspec((H, V)), _fullspec((1, V))],
        out_specs=_fullspec((M, V)),
    )(x, tr_w, tr_b.reshape(1, H), ln_g.reshape(1, H), ln_b.reshape(1, H),
      dec_w_t, dec_b.reshape(1, V))


# ----------------------------- parameter init -------------------------------
def init_params(key):
    def dense(key, shape):
        return 0.02 * jax.random.normal(key, shape, dtype=jnp.float32)

    keys = iter(jax.random.split(key, 64))
    word_emb = dense(next(keys), (VOCAB, HIDDEN))
    p = {
        "word_emb": word_emb,
        # Tied decoder weight, pre-transposed ONCE (no .T across the
        # pallas_call boundary every forward).
        "dec_w_t": word_emb.T,
        "pos_emb": dense(next(keys), (MAX_POS, HIDDEN)),
        "tok_emb": dense(next(keys), (TYPE_VOCAB, HIDDEN)),
        "emb_ln_g": jnp.ones((HIDDEN,), jnp.float32),
        "emb_ln_b": jnp.zeros((HIDDEN,), jnp.float32),
        # MLM head transform
        "tr_w": dense(next(keys), (HIDDEN, HIDDEN)),
        "tr_b": jnp.zeros((HIDDEN,), jnp.float32),
        "tr_ln_g": jnp.ones((HIDDEN,), jnp.float32),
        "tr_ln_b": jnp.zeros((HIDDEN,), jnp.float32),
        "dec_b": jnp.zeros((VOCAB,), jnp.float32),
        "layers": [],
    }
    for _ in range(N_LAYERS):
        p["layers"].append({
            # Q/K/V fused along the output dim (single matmul).
            "qkv_w": jnp.concatenate(
                [dense(next(keys), (HIDDEN, HIDDEN)) for _ in range(3)], axis=1),
            "qkv_b": jnp.zeros((3 * HIDDEN,), jnp.float32),
            "o_w": dense(next(keys), (HIDDEN, HIDDEN)),
            "o_b": jnp.zeros((HIDDEN,), jnp.float32),
            "attn_ln_g": jnp.ones((HIDDEN,), jnp.float32),
            "attn_ln_b": jnp.zeros((HIDDEN,), jnp.float32),
            "i_w": dense(next(keys), (HIDDEN, INTERMEDIATE)),
            "i_b": jnp.zeros((INTERMEDIATE,), jnp.float32),
            "f_w": dense(next(keys), (INTERMEDIATE, HIDDEN)),
            "f_b": jnp.zeros((HIDDEN,), jnp.float32),
            "ffn_ln_g": jnp.ones((HIDDEN,), jnp.float32),
            "ffn_ln_b": jnp.zeros((HIDDEN,), jnp.float32),
        })
    return p


# ----------------------------- full forward pass -----------------------------
def bert_masked_lm_forward(params, input_ids, attention_mask, token_type_ids):
    B, S = input_ids.shape

    # --- embeddings (gather glue in JAX, LayerNorm in Pallas) ---
    pos_ids = jnp.arange(S, dtype=jnp.int32)
    emb = (params["word_emb"][input_ids]
           + params["pos_emb"][pos_ids][None, :, :]
           + params["tok_emb"][token_type_ids])               # (B, S, H)
    x = embed_layernorm(emb.reshape(B * S, HIDDEN),
                        params["emb_ln_g"], params["emb_ln_b"])  # (B*S, H)

    # HF-style extended additive attention mask: 0 attended, -10000 masked.
    mask_add = (1.0 - attention_mask.astype(jnp.float32)) * -10000.0   # (B, S)

    # --- encoder: one fused Pallas kernel per layer ---
    for layer in params["layers"]:
        x = encoder_layer(x, mask_add, layer)

    # --- MLM head: one fused Pallas kernel (transform+GELU+LN+tied decoder) ---
    logits = mlm_head(x, params["tr_w"], params["tr_b"],
                      params["tr_ln_g"], params["tr_ln_b"],
                      params["dec_w_t"], params["dec_b"])      # (B*S, V)
    return logits.reshape(B, S, VOCAB)


# ----------------------------- driver ----------------------------------------
if __name__ == "__main__":
    key = jax.random.PRNGKey(0)
    pkey, dkey = jax.random.split(key)
    params = init_params(pkey)

    input_ids = jax.random.randint(dkey, (BATCH, SEQ), 0, VOCAB, dtype=jnp.int32)
    attention_mask = jnp.array(
        [[1] * SEQ, [1] * (SEQ - 2) + [0, 0]], dtype=jnp.int32)
    token_type_ids = jnp.array(
        [[0] * (SEQ // 2) + [1] * (SEQ // 2)] * BATCH, dtype=jnp.int32)

    fwd = jax.jit(bert_masked_lm_forward)
    logits = fwd(params, input_ids, attention_mask, token_type_ids)
    jax.block_until_ready(logits)

    assert logits.shape == (BATCH, SEQ, VOCAB)
    assert logits.dtype == jnp.float32
    print("KERNEL_OK")
</pallas_src>

<mosaic_0001>
module attributes {stable_mosaic.version = 11 : i64} {
  func.func @_emb_ln_kernel(%arg0: i32, %arg1: memref<16x32xf32, #tpu.memory_space<vmem>>, %arg2: memref<1x32xf32, #tpu.memory_space<vmem>>, %arg3: memref<1x32xf32, #tpu.memory_space<vmem>>, %arg4: memref<16x32xf32, #tpu.memory_space<vmem>>) attributes {dimension_semantics = [#tpu.dimension_semantics<arbitrary>], iteration_bounds = array<i64: 1>, scalar_prefetch = 0 : i64, scratch_operands = 0 : i64, tpu.core_type = #tpu.core_type<tc>, window_params = [{pipeline_mode = #tpu.pipeline_mode<synchronous>, transform_indices = @transform_0, window_bounds = array<i64: 16, 32>}, {pipeline_mode = #tpu.pipeline_mode<synchronous>, transform_indices = @transform_1, window_bounds = array<i64: 1, 32>}, {pipeline_mode = #tpu.pipeline_mode<synchronous>, transform_indices = @transform_2, window_bounds = array<i64: 1, 32>}, {pipeline_mode = #tpu.pipeline_mode<synchronous>, transform_indices = @transform_3, window_bounds = array<i64: 16, 32>}]} {
    %c0 = arith.constant 0 : index
    %c0_0 = arith.constant 0 : index
    %0 = vector.load %arg1[%c0, %c0_0] : memref<16x32xf32, #tpu.memory_space<vmem>>, vector<16x32xf32>
    %c0_1 = arith.constant 0 : index
    %c0_2 = arith.constant 0 : index
    %1 = vector.load %arg2[%c0_1, %c0_2] : memref<1x32xf32, #tpu.memory_space<vmem>>, vector<1x32xf32>
    %c0_3 = arith.constant 0 : index
    %c0_4 = arith.constant 0 : index
    %2 = vector.load %arg3[%c0_3, %c0_4] : memref<1x32xf32, #tpu.memory_space<vmem>>, vector<1x32xf32>
    %cst = arith.constant dense<0.000000e+00> : vector<16xf32>
    %3 = vector.multi_reduction <add>, %0, %cst [1] : vector<16x32xf32> to vector<16xf32>
    %4 = vector.shape_cast %3 : vector<16xf32> to vector<16x1xf32>
    %cst_5 = arith.constant 3.200000e+01 : f32
    %5 = vector.broadcast %cst_5 : f32 to vector<16x1xf32>
    %6 = arith.divf %4, %5 : vector<16x1xf32>
    %7 = vector.broadcast %6 : vector<16x1xf32> to vector<16x32xf32>
    %8 = arith.subf %0, %7 : vector<16x32xf32>
    %9 = arith.mulf %8, %8 : vector<16x32xf32>
    %cst_6 = arith.constant dense<0.000000e+00> : vector<16xf32>
    %10 = vector.multi_reduction <add>, %9, %cst_6 [1] : vector<16x32xf32> to vector<16xf32>
    %11 = vector.shape_cast %10 : vector<16xf32> to vector<16x1xf32>
    %cst_7 = arith.constant 3.200000e+01 : f32
    %12 = vector.broadcast %cst_7 : f32 to vector<16x1xf32>
    %13 = arith.divf %11, %12 : vector<16x1xf32>
    %cst_8 = arith.constant 9.99999996E-13 : f32
    %14 = vector.broadcast %cst_8 : f32 to vector<16x1xf32>
    %15 = arith.addf %13, %14 : vector<16x1xf32>
    %16 = math.rsqrt %15 : vector<16x1xf32>
    %17 = vector.broadcast %16 : vector<16x1xf32> to vector<16x32xf32>
    %18 = arith.mulf %8, %17 : vector<16x32xf32>
    %19 = vector.broadcast %1 : vector<1x32xf32> to vector<16x32xf32>
    %20 = arith.mulf %18, %19 : vector<16x32xf32>
    %21 = vector.broadcast %2 : vector<1x32xf32> to vector<16x32xf32>
    %22 = arith.addf %20, %21 : vector<16x32xf32>
    %c0_9 = arith.constant 0 : index
    %c0_10 = arith.constant 0 : index
    %23 = vector.load %arg4[%c0_9, %c0_10] : memref<16x32xf32, #tpu.memory_space<vmem>>, vector<16x32xf32>
    tpu.vector_store %arg4[%c0_9, %c0_10], %22 {strides = array<i32>} : memref<16x32xf32, #tpu.memory_space<vmem>>, vector<16x32xf32>,
    return
  }
  func.func @transform_0(%arg0: i32) -> (i32, i32) {
    %c0_i32 = arith.constant 0 : i32
    %c0_i32_0 = arith.constant 0 : i32
    %c0_i32_1 = arith.constant 0 : i32
    return %c0_i32, %c0_i32_0 : i32, i32
  }
  func.func @transform_1(%arg0: i32) -> (i32, i32) {
    %c0_i32 = arith.constant 0 : i32
    %c0_i32_0 = arith.constant 0 : i32
    %c0_i32_1 = arith.constant 0 : i32
    return %c0_i32, %c0_i32_0 : i32, i32
  }
  func.func @transform_2(%arg0: i32) -> (i32, i32) {
    %c0_i32 = arith.constant 0 : i32
    %c0_i32_0 = arith.constant 0 : i32
    %c0_i32_1 = arith.constant 0 : i32
    return %c0_i32, %c0_i32_0 : i32, i32
  }
  func.func @transform_3(%arg0: i32) -> (i32, i32) {
    %c0_i32 = arith.constant 0 : i32
    %c0_i32_0 = arith.constant 0 : i32
    %c0_i32_1 = arith.constant 0 : i32
    return %c0_i32, %c0_i32_0 : i32, i32
  }
}

module attributes {stable_mosaic.version = 11 : i64} {
  func.func @_encoder_layer_kernel(%arg0: i32, %arg1: memref<16x32xf32, #tpu.memory_space<vmem>>, %arg2: memref<2x8xf32, #tpu.memory_space<vmem>>, %arg3: memref<32x96xf32, #tpu.memory_space<vmem>>, %arg4: memref<1x96xf32, #tpu.memory_space<vmem>>, %arg5: memref<32x32xf32, #tpu.memory_space<vmem>>, %arg6: memref<1x32xf32, #tpu.memory_space<vmem>>, %arg7: memref<1x32xf32, #tpu.memory_space<vmem>>, %arg8: memref<1x32xf32, #tpu.memory_space<vmem>>, %arg9: memref<32x64xf32, #tpu.memory_space<vmem>>, %arg10: memref<1x64xf32, #tpu.memory_space<vmem>>, %arg11: memref<64x32xf32, #tpu.memory_space<vmem>>, %arg12: memref<1x32xf32, #tpu.memory_space<vmem>>, %arg13: memref<1x32xf32, #tpu.memory_space<vmem>>, %arg14: memref<1x32xf32, #tpu.memory_space<vmem>>, %arg15: memref<16x32xf32, #tpu.memory_space<vmem>>, %arg16: memref<16x32xf32, #tpu.memory_space<vmem>>) attributes {dimension_semantics = [#tpu.dimension_semantics<arbitrary>], iteration_bounds = array<i64: 1>, scalar_prefetch = 0 : i64, scratch_operands = 1 : i64, tpu.core_type = #tpu.core_type<tc>, window_params = [{pipeline_mode = #tpu.pipeline_mode<synchronous>, transform_indices = @transform_0, window_bounds = array<i64: 16, 32>}, {pipeline_mode = #tpu.pipeline_mode<synchronous>, transform_indices = @transform_1, window_bounds = array<i64: 2, 8>}, {pipeline_mode = #tpu.pipeline_mode<synchronous>, transform_indices = @transform_2, window_bounds = array<i64: 32, 96>}, {pipeline_mode = #tpu.pipeline_mode<synchronous>, transform_indices = @transform_3, window_bounds = array<i64: 1, 96>}, {pipeline_mode = #tpu.pipeline_mode<synchronous>, transform_indices = @transform_4, window_bounds = array<i64: 32, 32>}, {pipeline_mode = #tpu.pipeline_mode<synchronous>, transform_indices = @transform_5, window_bounds = array<i64: 1, 32>}, {pipeline_mode = #tpu.pipeline_mode<synchronous>, transform_indices = @transform_6, window_bounds = array<i64: 1, 32>}, {pipeline_mode = #tpu.pipeline_mode<synchronous>, transform_indices = @transform_7, window_bounds = array<i64: 1, 32>}, {pipeline_mode = #tpu.pipeline_mode<synchronous>, transform_indices = @transform_8, window_bounds = array<i64: 32, 64>}, {pipeline_mode = #tpu.pipeline_mode<synchronous>, transform_indices = @transform_9, window_bounds = array<i64: 1, 64>}, {pipeline_mode = #tpu.pipeline_mode<synchronous>, transform_indices = @transform_10, window_bounds = array<i64: 64, 32>}, {pipeline_mode = #tpu.pipeline_mode<synchronous>, transform_indices = @transform_11, window_bounds = array<i64: 1, 32>}, {pipeline_mode = #tpu.pipeline_mode<synchronous>, transform_indices = @transform_12, window_bounds = array<i64: 1, 32>}, {pipeline_mode = #tpu.pipeline_mode<synchronous>, transform_indices = @transform_13, window_bounds = array<i64: 1, 32>}, {pipeline_mode = #tpu.pipeline_mode<synchronous>, transform_indices = @transform_14, window_bounds = array<i64: 16, 32>}]} {
    %c0 = arith.constant 0 : index
    %c0_0 = arith.constant 0 : index
    %0 = vector.load %arg1[%c0, %c0_0] : memref<16x32xf32, #tpu.memory_space<vmem>>, vector<16x32xf32>
    %c0_1 = arith.constant 0 : index
    %c0_2 = arith.constant 0 : index
    %1 = vector.load %arg3[%c0_1, %c0_2] : memref<32x96xf32, #tpu.memory_space<vmem>>, vector<32x96xf32>
    %cst = arith.constant dense<0.000000e+00> : vector<16x96xf32>
    %2 = tpu.matmul %0, %1, %cst {dimension_numbers = #tpu.dot_dimension_numbers<[1], [0], [0], [1], [0, 0, 1, 1], [], []>} : vector<16x32xf32>, vector<32x96xf32>, vector<16x96xf32> -> vector<16x96xf32>
    %c0_3 = arith.constant 0 : index
    %c0_4 = arith.constant 0 : index
    %3 = vector.load %arg4[%c0_3, %c0_4] : memref<1x96xf32, #tpu.memory_space<vmem>>, vector<1x96xf32>
    %4 = vector.broadcast %3 : vector<1x96xf32> to vector<16x96xf32>
    %5 = arith.addf %2, %4 : vector<16x96xf32>
    %c0_5 = arith.constant 0 : index
    %c0_6 = arith.constant 0 : index
    %6 = vector.load %arg2[%c0_5, %c0_6] : memref<2x8xf32, #tpu.memory_space<vmem>>, vector<1x8xf32>
    %7 = vector.extract_strided_slice %5 {offsets = [0, 0], sizes = [8, 16], strides = [1, 1]} : vector<16x96xf32> to vector<8x16xf32>
    %8 = vector.extract_strided_slice %5 {offsets = [0, 32], sizes = [8, 16], strides = [1, 1]} : vector<16x96xf32> to vector<8x16xf32>
    %9 = vector.extract_strided_slice %5 {offsets = [0, 64], sizes = [8, 16], strides = [1, 1]} : vector<16x96xf32> to vector<8x16xf32>
    %10 = tpu.transpose %8, [1, 0] : vector<8x16xf32> -> vector<16x8xf32>
    %cst_7 = arith.constant dense<0.000000e+00> : vector<8x8xf32>
    %11 = tpu.matmul %7, %10, %cst_7 {dimension_numbers = #tpu.dot_dimension_numbers<[1], [0], [0], [1], [0, 0, 1, 1], [], []>} : vector<8x16xf32>, vector<16x8xf32>, vector<8x8xf32> -> vector<8x8xf32>
    %cst_8 = arith.constant 2.500000e-01 : f32
    %12 = vector.broadcast %cst_8 : f32 to vector<8x8xf32>
    %13 = arith.mulf %11, %12 : vector<8x8xf32>
    %14 = vector.broadcast %6 : vector<1x8xf32> to vector<8x8xf32>
    %15 = arith.addf %13, %14 : vector<8x8xf32>
    %cst_9 = arith.constant dense<0xFF800000> : vector<8xf32>
    %16 = vector.multi_reduction <maximumf>, %15, %cst_9 [1] : vector<8x8xf32> to vector<8xf32>
    %17 = vector.shape_cast %16 : vector<8xf32> to vector<8x1xf32>
    %18 = vector.broadcast %17 : vector<8x1xf32> to vector<8x8xf32>
    %19 = arith.subf %15, %18 : vector<8x8xf32>
    %20 = math.exp %19 : vector<8x8xf32>
    %cst_10 = arith.constant dense<0.000000e+00> : vector<8xf32>
    %21 = vector.multi_reduction <add>, %20, %cst_10 [1] : vector<8x8xf32> to vector<8xf32>
    %22 = vector.shape_cast %21 : vector<8xf32> to vector<8x1xf32>
    %23 = tpu.reciprocal %22 {approx = true} : vector<8x1xf32> -> vector<8x1xf32>
    %24 = vector.broadcast %23 : vector<8x1xf32> to vector<8x8xf32>
    %25 = arith.mulf %20, %24 : vector<8x8xf32>
    %cst_11 = arith.constant dense<0.000000e+00> : vector<8x16xf32>
    %26 = tpu.matmul %25, %9, %cst_11 {dimension_numbers = #tpu.dot_dimension_numbers<[1], [0], [0], [1], [0, 0, 1, 1], [], []>} : vector<8x8xf32>, vector<8x16xf32>, vector<8x16xf32> -> vector<8x16xf32>
    %c0_12 = arith.constant 0 : index
    %c0_13 = arith.constant 0 : index
    %27 = vector.load %arg16[%c0_12, %c0_13] : memref<16x32xf32, #tpu.memory_space<vmem>>, vector<8x16xf32>
    tpu.vector_store %arg16[%c0_12, %c0_13], %26 {strides = array<i32>} : memref<16x32xf32, #tpu.memory_space<vmem>>, vector<8x16xf32>,
    %28 = vector.extract_strided_slice %5 {offsets = [0, 16], sizes = [8, 16], strides = [1, 1]} : vector<16x96xf32> to vector<8x16xf32>
    %29 = vector.extract_strided_slice %5 {offsets = [0, 48], sizes = [8, 16], strides = [1, 1]} : vector<16x96xf32> to vector<8x16xf32>
    %30 = vector.extract_strided_slice %5 {offsets = [0, 80], sizes = [8, 16], strides = [1, 1]} : vector<16x96xf32> to vector<8x16xf32>
    %31 = tpu.transpose %29, [1, 0] : vector<8x16xf32> -> vector<16x8xf32>
    %cst_14 = arith.constant dense<0.000000e+00> : vector<8x8xf32>
    %32 = tpu.matmul %28, %31, %cst_14 {dimension_numbers = #tpu.dot_dimension_numbers<[1], [0], [0], [1], [0, 0, 1, 1], [], []>} : vector<8x16xf32>, vector<16x8xf32>, vector<8x8xf32> -> vector<8x8xf32>
    %cst_15 = arith.constant 2.500000e-01 : f32
    %33 = vector.broadcast %cst_15 : f32 to vector<8x8xf32>
    %34 = arith.mulf %32, %33 : vector<8x8xf32>
    %35 = vector.broadcast %6 : vector<1x8xf32> to vector<8x8xf32>
    %36 = arith.addf %34, %35 : vector<8x8xf32>
    %cst_16 = arith.constant dense<0xFF800000> : vector<8xf32>
    %37 = vector.multi_reduction <maximumf>, %36, %cst_16 [1] : vector<8x8xf32> to vector<8xf32>
    %38 = vector.shape_cast %37 : vector<8xf32> to vector<8x1xf32>
    %39 = vector.broadcast %38 : vector<8x1xf32> to vector<8x8xf32>
    %40 = arith.subf %36, %39 : vector<8x8xf32>
    %41 = math.exp %40 : vector<8x8xf32>
    %cst_17 = arith.constant dense<0.000000e+00> : vector<8xf32>
    %42 = vector.multi_reduction <add>, %41, %cst_17 [1] : vector<8x8xf32> to vector<8xf32>
    %43 = vector.shape_cast %42 : vector<8xf32> to vector<8x1xf32>
    %44 = tpu.reciprocal %43 {approx = true} : vector<8x1xf32> -> vector<8x1xf32>
    %45 = vector.broadcast %44 : vector<8x1xf32> to vector<8x8xf32>
    %46 = arith.mulf %41, %45 : vector<8x8xf32>
    %cst_18 = arith.constant dense<0.000000e+00> : vector<8x16xf32>
    %47 = tpu.matmul %46, %30, %cst_18 {dimension_numbers = #tpu.dot_dimension_numbers<[1], [0], [0], [1], [0, 0, 1, 1], [], []>} : vector<8x8xf32>, vector<8x16xf32>, vector<8x16xf32> -> vector<8x16xf32>
    %c0_19 = arith.constant 0 : index
    %c16 = arith.constant 16 : index
    %48 = vector.load %arg16[%c0_19, %c16] : memref<16x32xf32, #tpu.memory_space<vmem>>, vector<8x16xf32>
    tpu.vector_store %arg16[%c0_19, %c16], %47 {strides = array<i32>} : memref<16x32xf32, #tpu.memory_space<vmem>>, vector<8x16xf32>,
    %c1 = arith.constant 1 : index
    %c0_20 = arith.constant 0 : index
    %49 = vector.load %arg2[%c1, %c0_20] : memref<2x8xf32, #tpu.memory_space<vmem>>, vector<1x8xf32>
    %50 = vector.extract_strided_slice %5 {offsets = [8, 0], sizes = [8, 16], strides = [1, 1]} : vector<16x96xf32> to vector<8x16xf32>
    %51 = vector.extract_strided_slice %5 {offsets = [8, 32], sizes = [8, 16], strides = [1, 1]} : vector<16x96xf32> to vector<8x16xf32>
    %52 = vector.extract_strided_slice %5 {offsets = [8, 64], sizes = [8, 16], strides = [1, 1]} : vector<16x96xf32> to vector<8x16xf32>
    %53 = tpu.transpose %51, [1, 0] : vector<8x16xf32> -> vector<16x8xf32>
    %cst_21 = arith.constant dense<0.000000e+00> : vector<8x8xf32>
    %54 = tpu.matmul %50, %53, %cst_21 {dimension_numbers = #tpu.dot_dimension_numbers<[1], [0], [0], [1], [0, 0, 1, 1], [], []>} : vector<8x16xf32>, vector<16x8xf32>, vector<8x8xf32> -> vector<8x8xf32>
    %cst_22 = arith.constant 2.500000e-01 : f32
    %55 = vector.broadcast %cst_22 : f32 to vector<8x8xf32>
    %56 = arith.mulf %54, %55 : vector<8x8xf32>
    %57 = vector.broadcast %49 : vector<1x8xf32> to vector<8x8xf32>
    %58 = arith.addf %56, %57 : vector<8x8xf32>
    %cst_23 = arith.constant dense<0xFF800000> : vector<8xf32>
    %59 = vector.multi_reduction <maximumf>, %58, %cst_23 [1] : vector<8x8xf32> to vector<8xf32>
    %60 = vector.shape_cast %59 : vector<8xf32> to vector<8x1xf32>
    %61 = vector.broadcast %60 : vector<8x1xf32> to vector<8x8xf32>
    %62 = arith.subf %58, %61 : vector<8x8xf32>
    %63 = math.exp %62 : vector<8x8xf32>
    %cst_24 = arith.constant dense<0.000000e+00> : vector<8xf32>
    %64 = vector.multi_reduction <add>, %63, %cst_24 [1] : vector<8x8xf32> to vector<8xf32>
    %65 = vector.shape_cast %64 : vector<8xf32> to vector<8x1xf32>
    %66 = tpu.reciprocal %65 {approx = true} : vector<8x1xf32> -> vector<8x1xf32>
    %67 = vector.broadcast %66 : vector<8x1xf32> to vector<8x8xf32>
    %68 = arith.mulf %63, %67 : vector<8x8xf32>
    %cst_25 = arith.constant dense<0.000000e+00> : vector<8x16xf32>
    %69 = tpu.matmul %68, %52, %cst_25 {dimension_numbers = #tpu.dot_dimension_numbers<[1], [0], [0], [1], [0, 0, 1, 1], [], []>} : vector<8x8xf32>, vector<8x16xf32>, vector<8x16xf32> -> vector<8x16xf32>
    %c8 = arith.constant 8 : index
    %c0_26 = arith.constant 0 : index
    %70 = vector.load %arg16[%c8, %c0_26] : memref<16x32xf32, #tpu.memory_space<vmem>>, vector<8x16xf32>
    tpu.vector_store %arg16[%c8, %c0_26], %69 {strides = array<i32>} : memref<16x32xf32, #tpu.memory_space<vmem>>, vector<8x16xf32>,
    %71 = vector.extract_strided_slice %5 {offsets = [8, 16], sizes = [8, 16], strides = [1, 1]} : vector<16x96xf32> to vector<8x16xf32>
    %72 = vector.extract_strided_slice %5 {offsets = [8, 48], sizes = [8, 16], strides = [1, 1]} : vector<16x96xf32> to vector<8x16xf32>
    %73 = vector.extract_strided_slice %5 {offsets = [8, 80], sizes = [8, 16], strides = [1, 1]} : vector<16x96xf32> to vector<8x16xf32>
    %74 = tpu.transpose %72, [1, 0] : vector<8x16xf32> -> vector<16x8xf32>
    %cst_27 = arith.constant dense<0.000000e+00> : vector<8x8xf32>
    %75 = tpu.matmul %71, %74, %cst_27 {dimension_numbers = #tpu.dot_dimension_numbers<[1], [0], [0], [1], [0, 0, 1, 1], [], []>} : vector<8x16xf32>, vector<16x8xf32>, vector<8x8xf32> -> vector<8x8xf32>
    %cst_28 = arith.constant 2.500000e-01 : f32
    %76 = vector.broadcast %cst_28 : f32 to vector<8x8xf32>
    %77 = arith.mulf %75, %76 : vector<8x8xf32>
    %78 = vector.broadcast %49 : vector<1x8xf32> to vector<8x8xf32>
    %79 = arith.addf %77, %78 : vector<8x8xf32>
    %cst_29 = arith.constant dense<0xFF800000> : vector<8xf32>
    %80 = vector.multi_reduction <maximumf>, %79, %cst_29 [1] : vector<8x8xf32> to vector<8xf32>
    %81 = vector.shape_cast %80 : vector<8xf32> to vector<8x1xf32>
    %82 = vector.broadcast %81 : vector<8x1xf32> to vector<8x8xf32>
    %83 = arith.subf %79, %82 : vector<8x8xf32>
    %84 = math.exp %83 : vector<8x8xf32>
    %cst_30 = arith.constant dense<0.000000e+00> : vector<8xf32>
    %85 = vector.multi_reduction <add>, %84, %cst_30 [1] : vector<8x8xf32> to vector<8xf32>
    %86 = vector.shape_cast %85 : vector<8xf32> to vector<8x1xf32>
    %87 = tpu.reciprocal %86 {approx = true} : vector<8x1xf32> -> vector<8x1xf32>
    %88 = vector.broadcast %87 : vector<8x1xf32> to vector<8x8xf32>
    %89 = arith.mulf %84, %88 : vector<8x8xf32>
    %cst_31 = arith.constant dense<0.000000e+00> : vector<8x16xf32>
    %90 = tpu.matmul %89, %73, %cst_31 {dimension_numbers = #tpu.dot_dimension_numbers<[1], [0], [0], [1], [0, 0, 1, 1], [], []>} : vector<8x8xf32>, vector<8x16xf32>, vector<8x16xf32> -> vector<8x16xf32>
    %c8_32 = arith.constant 8 : index
    %c16_33 = arith.constant 16 : index
    %91 = vector.load %arg16[%c8_32, %c16_33] : memref<16x32xf32, #tpu.memory_space<vmem>>, vector<8x16xf32>
    tpu.vector_store %arg16[%c8_32, %c16_33], %90 {strides = array<i32>} : memref<16x32xf32, #tpu.memory_space<vmem>>, vector<8x16xf32>,
    %c0_34 = arith.constant 0 : index
    %c0_35 = arith.constant 0 : index
    %92 = vector.load %arg16[%c0_34, %c0_35] : memref<16x32xf32, #tpu.memory_space<vmem>>, vector<16x32xf32>
    %c0_36 = arith.constant 0 : index
    %c0_37 = arith.constant 0 : index
    %93 = vector.load %arg5[%c0_36, %c0_37] : memref<32x32xf32, #tpu.memory_space<vmem>>, vector<32x32xf32>
    %cst_38 = arith.constant dense<0.000000e+00> : vector<16x32xf32>
    %94 = tpu.matmul %92, %93, %cst_38 {dimension_numbers = #tpu.dot_dimension_numbers<[1], [0], [0], [1], [0, 0, 1, 1], [], []>} : vector<16x32xf32>, vector<32x32xf32>, vector<16x32xf32> -> vector<16x32xf32>
    %c0_39 = arith.constant 0 : index
    %c0_40 = arith.constant 0 : index
    %95 = vector.load %arg6[%c0_39, %c0_40] : memref<1x32xf32, #tpu.memory_space<vmem>>, vector<1x32xf32>
    %96 = vector.broadcast %95 : vector<1x32xf32> to vector<16x32xf32>
    %97 = arith.addf %94, %96 : vector<16x32xf32>
    %98 = arith.addf %97, %0 : vector<16x32xf32>
    %c0_41 = arith.constant 0 : index
    %c0_42 = arith.constant 0 : index
    %99 = vector.load %arg7[%c0_41, %c0_42] : memref<1x32xf32, #tpu.memory_space<vmem>>, vector<1x32xf32>
    %c0_43 = arith.constant 0 : index
    %c0_44 = arith.constant 0 : index
    %100 = vector.load %arg8[%c0_43, %c0_44] : memref<1x32xf32, #tpu.memory_space<vmem>>, vector<1x32xf32>
    %cst_45 = arith.constant dense<0.000000e+00> : vector<16xf32>
    %101 = vector.multi_reduction <add>, %98, %cst_45 [1] : vector<16x32xf32> to vector<16xf32>
    %102 = vector.shape_cast %101 : vector<16xf32> to vector<16x1xf32>
    %cst_46 = arith.constant 3.200000e+01 : f32
    %103 = vector.broadcast %cst_46 : f32 to vector<16x1xf32>
    %104 = arith.divf %102, %103 : vector<16x1xf32>
    %105 = vector.broadcast %104 : vector<16x1xf32> to vector<16x32xf32>
    %106 = arith.subf %98, %105 : vector<16x32xf32>
    %107 = arith.mulf %106, %106 : vector<16x32xf32>
    %cst_47 = arith.constant dense<0.000000e+00> : vector<16xf32>
    %108 = vector.multi_reduction <add>, %107, %cst_47 [1] : vector<16x32xf32> to vector<16xf32>
    %109 = vector.shape_cast %108 : vector<16xf32> to vector<16x1xf32>
    %cst_48 = arith.constant 3.200000e+01 : f32
    %110 = vector.broadcast %cst_48 : f32 to vector<16x1xf32>
    %111 = arith.divf %109, %110 : vector<16x1xf32>
    %cst_49 = arith.constant 9.99999996E-13 : f32
    %112 = vector.broadcast %cst_49 : f32 to vector<16x1xf32>
    %113 = arith.addf %111, %112 : vector<16x1xf32>
    %114 = math.rsqrt %113 : vector<16x1xf32>
    %115 = vector.broadcast %114 : vector<16x1xf32> to vector<16x32xf32>
    %116 = arith.mulf %106, %115 : vector<16x32xf32>
    %117 = vector.broadcast %99 : vector<1x32xf32> to vector<16x32xf32>
    %118 = arith.mulf %116, %117 : vector<16x32xf32>
    %119 = vector.broadcast %100 : vector<1x32xf32> to vector<16x32xf32>
    %120 = arith.addf %118, %119 : vector<16x32xf32>
    %c0_50 = arith.constant 0 : index
    %c0_51 = arith.constant 0 : index
    %121 = vector.load %arg9[%c0_50, %c0_51] : memref<32x64xf32, #tpu.memory_space<vmem>>, vector<32x64xf32>
    %cst_52 = arith.constant dense<0.000000e+00> : vector<16x64xf32>
    %122 = tpu.matmul %120, %121, %cst_52 {dimension_numbers = #tpu.dot_dimension_numbers<[1], [0], [0], [1], [0, 0, 1, 1], [], []>} : vector<16x32xf32>, vector<32x64xf32>, vector<16x64xf32> -> vector<16x64xf32>
    %c0_53 = arith.constant 0 : index
    %c0_54 = arith.constant 0 : index
    %123 = vector.load %arg10[%c0_53, %c0_54] : memref<1x64xf32, #tpu.memory_space<vmem>>, vector<1x64xf32>
    %124 = vector.broadcast %123 : vector<1x64xf32> to vector<16x64xf32>
    %125 = arith.addf %122, %124 : vector<16x64xf32>
    %cst_55 = arith.constant 5.000000e-01 : f32
    %126 = vector.broadcast %cst_55 : f32 to vector<16x64xf32>
    %127 = arith.mulf %126, %125 : vector<16x64xf32>
    %cst_56 = arith.constant 4.471500e-02 : f32
    %128 = vector.broadcast %cst_56 : f32 to vector<16x64xf32>
    %129 = arith.mulf %128, %125 : vector<16x64xf32>
    %130 = arith.mulf %129, %125 : vector<16x64xf32>
    %131 = arith.mulf %130, %125 : vector<16x64xf32>
    %132 = arith.addf %125, %131 : vector<16x64xf32>
    %cst_57 = arith.constant 0.797884583 : f32
    %133 = vector.broadcast %cst_57 : f32 to vector<16x64xf32>
    %134 = arith.mulf %133, %132 : vector<16x64xf32>
    %135 = math.tanh %134 : vector<16x64xf32>
    %cst_58 = arith.constant 1.000000e+00 : f32
    %136 = vector.broadcast %cst_58 : f32 to vector<16x64xf32>
    %137 = arith.addf %136, %135 : vector<16x64xf32>
    %138 = arith.mulf %127, %137 : vector<16x64xf32>
    %c0_59 = arith.constant 0 : index
    %c0_60 = arith.constant 0 : index
    %139 = vector.load %arg11[%c0_59, %c0_60] : memref<64x32xf32, #tpu.memory_space<vmem>>, vector<64x32xf32>
    %cst_61 = arith.constant dense<0.000000e+00> : vector<16x32xf32>
    %140 = tpu.matmul %138, %139, %cst_61 {dimension_numbers = #tpu.dot_dimension_numbers<[1], [0], [0], [1], [0, 0, 1, 1], [], []>} : vector<16x64xf32>, vector<64x32xf32>, vector<16x32xf32> -> vector<16x32xf32>
    %c0_62 = arith.constant 0 : index
    %c0_63 = arith.constant 0 : index
    %141 = vector.load %arg12[%c0_62, %c0_63] : memref<1x32xf32, #tpu.memory_space<vmem>>, vector<1x32xf32>
    %142 = vector.broadcast %141 : vector<1x32xf32> to vector<16x32xf32>
    %143 = arith.addf %140, %142 : vector<16x32xf32>
    %144 = arith.addf %143, %120 : vector<16x32xf32>
    %c0_64 = arith.constant 0 : index
    %c0_65 = arith.constant 0 : index
    %145 = vector.load %arg13[%c0_64, %c0_65] : memref<1x32xf32, #tpu.memory_space<vmem>>, vector<1x32xf32>
    %c0_66 = arith.constant 0 : index
    %c0_67 = arith.constant 0 : index
    %146 = vector.load %arg14[%c0_66, %c0_67] : memref<1x32xf32, #tpu.memory_space<vmem>>, vector<1x32xf32>
    %cst_68 = arith.constant dense<0.000000e+00> : vector<16xf32>
    %147 = vector.multi_reduction <add>, %144, %cst_68 [1] : vector<16x32xf32> to vector<16xf32>
    %148 = vector.shape_cast %147 : vector<16xf32> to vector<16x1xf32>
    %cst_69 = arith.constant 3.200000e+01 : f32
    %149 = vector.broadcast %cst_69 : f32 to vector<16x1xf32>
    %150 = arith.divf %148, %149 : vector<16x1xf32>
    %151 = vector.broadcast %150 : vector<16x1xf32> to vector<16x32xf32>
    %152 = arith.subf %144, %151 : vector<16x32xf32>
    %153 = arith.mulf %152, %152 : vector<16x32xf32>
    %cst_70 = arith.constant dense<0.000000e+00> : vector<16xf32>
    %154 = vector.multi_reduction <add>, %153, %cst_70 [1] : vector<16x32xf32> to vector<16xf32>
    %155 = vector.shape_cast %154 : vector<16xf32> to vector<16x1xf32>
    %cst_71 = arith.constant 3.200000e+01 : f32
    %156 = vector.broadcast %cst_71 : f32 to vector<16x1xf32>
    %157 = arith.divf %155, %156 : vector<16x1xf32>
    %cst_72 = arith.constant 9.99999996E-13 : f32
    %158 = vector.broadcast %cst_72 : f32 to vector<16x1xf32>
    %159 = arith.addf %157, %158 : vector<16x1xf32>
    %160 = math.rsqrt %159 : vector<16x1xf32>
    %161 = vector.broadcast %160 : vector<16x1xf32> to vector<16x32xf32>
    %162 = arith.mulf %152, %161 : vector<16x32xf32>
    %163 = vector.broadcast %145 : vector<1x32xf32> to vector<16x32xf32>
    %164 = arith.mulf %162, %163 : vector<16x32xf32>
    %165 = vector.broadcast %146 : vector<1x32xf32> to vector<16x32xf32>
    %166 = arith.addf %164, %165 : vector<16x32xf32>
    %c0_73 = arith.constant 0 : index
    %c0_74 = arith.constant 0 : index
    %167 = vector.load %arg15[%c0_73, %c0_74] : memref<16x32xf32, #tpu.memory_space<vmem>>, vector<16x32xf32>
    tpu.vector_store %arg15[%c0_73, %c0_74], %166 {strides = array<i32>} : memref<16x32xf32, #tpu.memory_space<vmem>>, vector<16x32xf32>,
    return
  }
  func.func @transform_0(%arg0: i32) -> (i32, i32) {
    %c0_i32 = arith.constant 0 : i32
    %c0_i32_0 = arith.constant 0 : i32
    %c0_i32_1 = arith.constant 0 : i32
    return %c0_i32, %c0_i32_0 : i32, i32
  }
  func.func @transform_1(%arg0: i32) -> (i32, i32) {
    %c0_i32 = arith.constant 0 : i32
    %c0_i32_0 = arith.constant 0 : i32
    %c0_i32_1 = arith.constant 0 : i32
    return %c0_i32, %c0_i32_0 : i32, i32
  }
  func.func @transform_2(%arg0: i32) -> (i32, i32) {
    %c0_i32 = arith.constant 0 : i32
    %c0_i32_0 = arith.constant 0 : i32
    %c0_i32_1 = arith.constant 0 : i32
    return %c0_i32, %c0_i32_0 : i32, i32
  }
  func.func @transform_3(%arg0: i32) -> (i32, i32) {
    %c0_i32 = arith.constant 0 : i32
    %c0_i32_0 = arith.constant 0 : i32
    %c0_i32_1 = arith.constant 0 : i32
    return %c0_i32, %c0_i32_0 : i32, i32
  }
  func.func @transform_4(%arg0: i32) -> (i32, i32) {
    %c0_i32 = arith.constant 0 : i32
    %c0_i32_0 = arith.constant 0 : i32
    %c0_i32_1 = arith.constant 0 : i32
    return %c0_i32, %c0_i32_0 : i32, i32
  }
  func.func @transform_5(%arg0: i32) -> (i32, i32) {
    %c0_i32 = arith.constant 0 : i32
    %c0_i32_0 = arith.constant 0 : i32
    %c0_i32_1 = arith.constant 0 : i32
    return %c0_i32, %c0_i32_0 : i32, i32
  }
  func.func @transform_6(%arg0: i32) -> (i32, i32) {
    %c0_i32 = arith.constant 0 : i32
    %c0_i32_0 = arith.constant 0 : i32
    %c0_i32_1 = arith.constant 0 : i32
    return %c0_i32, %c0_i32_0 : i32, i32
  }
  func.func @transform_7(%arg0: i32) -> (i32, i32) {
    %c0_i32 = arith.constant 0 : i32
    %c0_i32_0 = arith.constant 0 : i32
    %c0_i32_1 = arith.constant 0 : i32
    return %c0_i32, %c0_i32_0 : i32, i32
  }
  func.func @transform_8(%arg0: i32) -> (i32, i32) {
    %c0_i32 = arith.constant 0 : i32
    %c0_i32_0 = arith.constant 0 : i32
    %c0_i32_1 = arith.constant 0 : i32
    return %c0_i32, %c0_i32_0 : i32, i32
  }
  func.func @transform_9(%arg0: i32) -> (i32, i32) {
    %c0_i32 = arith.constant 0 : i32
    %c0_i32_0 = arith.constant 0 : i32
    %c0_i32_1 = arith.constant 0 : i32
    return %c0_i32, %c0_i32_0 : i32, i32
  }
  func.func @transform_10(%arg0: i32) -> (i32, i32) {
    %c0_i32 = arith.constant 0 : i32
    %c0_i32_0 = arith.constant 0 : i32
    %c0_i32_1 = arith.constant 0 : i32
    return %c0_i32, %c0_i32_0 : i32, i32
  }
  func.func @transform_11(%arg0: i32) -> (i32, i32) {
    %c0_i32 = arith.constant 0 : i32
    %c0_i32_0 = arith.constant 0 : i32
    %c0_i32_1 = arith.constant 0 : i32
    return %c0_i32, %c0_i32_0 : i32, i32
  }
  func.func @transform_12(%arg0: i32) -> (i32, i32) {
    %c0_i32 = arith.constant 0 : i32
    %c0_i32_0 = arith.constant 0 : i32
    %c0_i32_1 = arith.constant 0 : i32
    return %c0_i32, %c0_i32_0 : i32, i32
  }
  func.func @transform_13(%arg0: i32) -> (i32, i32) {
    %c0_i32 = arith.constant 0 : i32
    %c0_i32_0 = arith.constant 0 : i32
    %c0_i32_1 = arith.constant 0 : i32
    return %c0_i32, %c0_i32_0 : i32, i32
  }
  func.func @transform_14(%arg0: i32) -> (i32, i32) {
    %c0_i32 = arith.constant 0 : i32
    %c0_i32_0 = arith.constant 0 : i32
    %c0_i32_1 = arith.constant 0 : i32
    return %c0_i32, %c0_i32_0 : i32, i32
  }
}

module attributes {stable_mosaic.version = 11 : i64} {
  func.func @_mlm_head_kernel(%arg0: i32, %arg1: memref<16x32xf32, #tpu.memory_space<vmem>>, %arg2: memref<32x32xf32, #tpu.memory_space<vmem>>, %arg3: memref<1x32xf32, #tpu.memory_space<vmem>>, %arg4: memref<1x32xf32, #tpu.memory_space<vmem>>, %arg5: memref<1x32xf32, #tpu.memory_space<vmem>>, %arg6: memref<32x128xf32, #tpu.memory_space<vmem>>, %arg7: memref<1x128xf32, #tpu.memory_space<vmem>>, %arg8: memref<16x128xf32, #tpu.memory_space<vmem>>) attributes {dimension_semantics = [#tpu.dimension_semantics<arbitrary>], iteration_bounds = array<i64: 1>, scalar_prefetch = 0 : i64, scratch_operands = 0 : i64, tpu.core_type = #tpu.core_type<tc>, window_params = [{pipeline_mode = #tpu.pipeline_mode<synchronous>, transform_indices = @transform_0, window_bounds = array<i64: 16, 32>}, {pipeline_mode = #tpu.pipeline_mode<synchronous>, transform_indices = @transform_1, window_bounds = array<i64: 32, 32>}, {pipeline_mode = #tpu.pipeline_mode<synchronous>, transform_indices = @transform_2, window_bounds = array<i64: 1, 32>}, {pipeline_mode = #tpu.pipeline_mode<synchronous>, transform_indices = @transform_3, window_bounds = array<i64: 1, 32>}, {pipeline_mode = #tpu.pipeline_mode<synchronous>, transform_indices = @transform_4, window_bounds = array<i64: 1, 32>}, {pipeline_mode = #tpu.pipeline_mode<synchronous>, transform_indices = @transform_5, window_bounds = array<i64: 32, 128>}, {pipeline_mode = #tpu.pipeline_mode<synchronous>, transform_indices = @transform_6, window_bounds = array<i64: 1, 128>}, {pipeline_mode = #tpu.pipeline_mode<synchronous>, transform_indices = @transform_7, window_bounds = array<i64: 16, 128>}]} {
    %c0 = arith.constant 0 : index
    %c0_0 = arith.constant 0 : index
    %0 = vector.load %arg1[%c0, %c0_0] : memref<16x32xf32, #tpu.memory_space<vmem>>, vector<16x32xf32>
    %c0_1 = arith.constant 0 : index
    %c0_2 = arith.constant 0 : index
    %1 = vector.load %arg2[%c0_1, %c0_2] : memref<32x32xf32, #tpu.memory_space<vmem>>, vector<32x32xf32>
    %cst = arith.constant dense<0.000000e+00> : vector<16x32xf32>
    %2 = tpu.matmul %0, %1, %cst {dimension_numbers = #tpu.dot_dimension_numbers<[1], [0], [0], [1], [0, 0, 1, 1], [], []>} : vector<16x32xf32>, vector<32x32xf32>, vector<16x32xf32> -> vector<16x32xf32>
    %c0_3 = arith.constant 0 : index
    %c0_4 = arith.constant 0 : index
    %3 = vector.load %arg3[%c0_3, %c0_4] : memref<1x32xf32, #tpu.memory_space<vmem>>, vector<1x32xf32>
    %4 = vector.broadcast %3 : vector<1x32xf32> to vector<16x32xf32>
    %5 = arith.addf %2, %4 : vector<16x32xf32>
    %cst_5 = arith.constant 5.000000e-01 : f32
    %6 = vector.broadcast %cst_5 : f32 to vector<16x32xf32>
    %7 = arith.mulf %6, %5 : vector<16x32xf32>
    %cst_6 = arith.constant 4.471500e-02 : f32
    %8 = vector.broadcast %cst_6 : f32 to vector<16x32xf32>
    %9 = arith.mulf %8, %5 : vector<16x32xf32>
    %10 = arith.mulf %9, %5 : vector<16x32xf32>
    %11 = arith.mulf %10, %5 : vector<16x32xf32>
    %12 = arith.addf %5, %11 : vector<16x32xf32>
    %cst_7 = arith.constant 0.797884583 : f32
    %13 = vector.broadcast %cst_7 : f32 to vector<16x32xf32>
    %14 = arith.mulf %13, %12 : vector<16x32xf32>
    %15 = math.tanh %14 : vector<16x32xf32>
    %cst_8 = arith.constant 1.000000e+00 : f32
    %16 = vector.broadcast %cst_8 : f32 to vector<16x32xf32>
    %17 = arith.addf %16, %15 : vector<16x32xf32>
    %18 = arith.mulf %7, %17 : vector<16x32xf32>
    %c0_9 = arith.constant 0 : index
    %c0_10 = arith.constant 0 : index
    %19 = vector.load %arg4[%c0_9, %c0_10] : memref<1x32xf32, #tpu.memory_space<vmem>>, vector<1x32xf32>
    %c0_11 = arith.constant 0 : index
    %c0_12 = arith.constant 0 : index
    %20 = vector.load %arg5[%c0_11, %c0_12] : memref<1x32xf32, #tpu.memory_space<vmem>>, vector<1x32xf32>
    %cst_13 = arith.constant dense<0.000000e+00> : vector<16xf32>
    %21 = vector.multi_reduction <add>, %18, %cst_13 [1] : vector<16x32xf32> to vector<16xf32>
    %22 = vector.shape_cast %21 : vector<16xf32> to vector<16x1xf32>
    %cst_14 = arith.constant 3.200000e+01 : f32
    %23 = vector.broadcast %cst_14 : f32 to vector<16x1xf32>
    %24 = arith.divf %22, %23 : vector<16x1xf32>
    %25 = vector.broadcast %24 : vector<16x1xf32> to vector<16x32xf32>
    %26 = arith.subf %18, %25 : vector<16x32xf32>
    %27 = arith.mulf %26, %26 : vector<16x32xf32>
    %cst_15 = arith.constant dense<0.000000e+00> : vector<16xf32>
    %28 = vector.multi_reduction <add>, %27, %cst_15 [1] : vector<16x32xf32> to vector<16xf32>
    %29 = vector.shape_cast %28 : vector<16xf32> to vector<16x1xf32>
    %cst_16 = arith.constant 3.200000e+01 : f32
    %30 = vector.broadcast %cst_16 : f32 to vector<16x1xf32>
    %31 = arith.divf %29, %30 : vector<16x1xf32>
    %cst_17 = arith.constant 9.99999996E-13 : f32
    %32 = vector.broadcast %cst_17 : f32 to vector<16x1xf32>
    %33 = arith.addf %31, %32 : vector<16x1xf32>
    %34 = math.rsqrt %33 : vector<16x1xf32>
    %35 = vector.broadcast %34 : vector<16x1xf32> to vector<16x32xf32>
    %36 = arith.mulf %26, %35 : vector<16x32xf32>
    %37 = vector.broadcast %19 : vector<1x32xf32> to vector<16x32xf32>
    %38 = arith.mulf %36, %37 : vector<16x32xf32>
    %39 = vector.broadcast %20 : vector<1x32xf32> to vector<16x32xf32>
    %40 = arith.addf %38, %39 : vector<16x32xf32>
    %c0_18 = arith.constant 0 : index
    %c0_19 = arith.constant 0 : index
    %41 = vector.load %arg6[%c0_18, %c0_19] : memref<32x128xf32, #tpu.memory_space<vmem>>, vector<32x128xf32>
    %cst_20 = arith.constant dense<0.000000e+00> : vector<16x128xf32>
    %42 = tpu.matmul %40, %41, %cst_20 {dimension_numbers = #tpu.dot_dimension_numbers<[1], [0], [0], [1], [0, 0, 1, 1], [], []>} : vector<16x32xf32>, vector<32x128xf32>, vector<16x128xf32> -> vector<16x128xf32>
    %c0_21 = arith.constant 0 : index
    %c0_22 = arith.constant 0 : index
    %43 = vector.load %arg7[%c0_21, %c0_22] : memref<1x128xf32, #tpu.memory_space<vmem>>, vector<1x128xf32>
    %44 = vector.broadcast %43 : vector<1x128xf32> to vector<16x128xf32>
    %45 = arith.addf %42, %44 : vector<16x128xf32>
    %c0_23 = arith.constant 0 : index
    %c0_24 = arith.constant 0 : index
    %46 = vector.load %arg8[%c0_23, %c0_24] : memref<16x128xf32, #tpu.memory_space<vmem>>, vector<16x128xf32>
    tpu.vector_store %arg8[%c0_23, %c0_24], %45 {strides = array<i32>} : memref<16x128xf32, #tpu.memory_space<vmem>>, vector<16x128xf32>,
    return
  }
  func.func @transform_0(%arg0: i32) -> (i32, i32) {
    %c0_i32 = arith.constant 0 : i32
    %c0_i32_0 = arith.constant 0 : i32
    %c0_i32_1 = arith.constant 0 : i32
    return %c0_i32, %c0_i32_0 : i32, i32
  }
  func.func @transform_1(%arg0: i32) -> (i32, i32) {
    %c0_i32 = arith.constant 0 : i32
    %c0_i32_0 = arith.constant 0 : i32
    %c0_i32_1 = arith.constant 0 : i32
    return %c0_i32, %c0_i32_0 : i32, i32
  }
  func.func @transform_2(%arg0: i32) -> (i32, i32) {
    %c0_i32 = arith.constant 0 : i32
    %c0_i32_0 = arith.constant 0 : i32
    %c0_i32_1 = arith.constant 0 : i32
    return %c0_i32, %c0_i32_0 : i32, i32
  }
  func.func @transform_3(%arg0: i32) -> (i32, i32) {
    %c0_i32 = arith.constant 0 : i32
    %c0_i32_0 = arith.constant 0 : i32
    %c0_i32_1 = arith.constant 0 : i32
    return %c0_i32, %c0_i32_0 : i32, i32
  }
  func.func @transform_4(%arg0: i32) -> (i32, i32) {
    %c0_i32 = arith.constant 0 : i32
    %c0_i32_0 = arith.constant 0 : i32
    %c0_i32_1 = arith.constant 0 : i32
    return %c0_i32, %c0_i32_0 : i32, i32
  }
  func.func @transform_5(%arg0: i32) -> (i32, i32) {
    %c0_i32 = arith.constant 0 : i32
    %c0_i32_0 = arith.constant 0 : i32
    %c0_i32_1 = arith.constant 0 : i32
    return %c0_i32, %c0_i32_0 : i32, i32
  }
  func.func @transform_6(%arg0: i32) -> (i32, i32) {
    %c0_i32 = arith.constant 0 : i32
    %c0_i32_0 = arith.constant 0 : i32
    %c0_i32_1 = arith.constant 0 : i32
    return %c0_i32, %c0_i32_0 : i32, i32
  }
  func.func @transform_7(%arg0: i32) -> (i32, i32) {
    %c0_i32 = arith.constant 0 : i32
    %c0_i32_0 = arith.constant 0 : i32
    %c0_i32_1 = arith.constant 0 : i32
    return %c0_i32, %c0_i32_0 : i32, i32
  }
}

</mosaic_0001>

<llo_original>
// kernel: bert_masked_lm_forward.4
$region0: #{bert_masked_lm_forward.4}
  #allocation0 [shape = 'u32[]', space=smem, size = 0x4, offset = 0x4, fixed_abs, tag = 'smem constant byte address 0x4 - core index']
  #allocation1 [shape = 'u32[72,128]{1,0:T(1,128)}', space=vmem, size = 0x9000, scoped, tag = 'internal scratch']
  %s0 = inlined_call_operand.vmem [shape: f32[16,32], index: 0, kind: input, shape index: {}]
  %s1 = inlined_call_operand.vmem [shape: f32[1,32], index: 1, kind: input, shape index: {}]
  %s2 = inlined_call_operand.vmem [shape: f32[1,32], index: 2, kind: input, shape index: {}]
  %s3 = inlined_call_operand.vmem [shape: f32[16,32], index: 3, kind: output, shape index: {}]
  %s4 = sld [smem:[#allocation0]]
  $region22: #{bert_masked_lm_forward.4} parent=0
    _
  %s6 = ssub.s32 1, %s4
  %s7 = scalar_select 0, %s6, %s4
  // Predicated region
  $region2: #{bert_masked_lm_forward.4} parent=0 // pred_check
    _
  $region3: #{bert_masked_lm_forward.4} parent=0 // pred_check_branch
    %9 = sbr.rel (0) target = $region5
  $region4: #{bert_masked_lm_forward.4} parent=0 // pred_region
    _
  $region5: #{bert_masked_lm_forward.4} parent=0 // pred_fallthru
    _
  // Predicated region
  $region6: #{bert_masked_lm_forward.4} parent=0 // pred_check
    _
  $region7: #{bert_masked_lm_forward.4} parent=0 // pred_check_branch
    %11 = sbr.rel (0) target = $region9
  $region8: #{bert_masked_lm_forward.4} parent=0 // pred_region
    _
  $region9: #{bert_masked_lm_forward.4} parent=0 // pred_fallthru
    _
  // Predicated region
  $region10: #{bert_masked_lm_forward.4} parent=0 // pred_check
    _
  $region11: #{bert_masked_lm_forward.4} parent=0 // pred_check_branch
    %13 = sbr.rel (0) target = $region13
  $region12: #{bert_masked_lm_forward.4} parent=0 // pred_region
    _
  $region13: #{bert_masked_lm_forward.4} parent=0 // pred_fallthru
    _
  %v14 = vld [vmem:[%s0] sm:$0xff]
  %v15 = vld [vmem:[%s0 + $0x8] sm:$0xff]
  %v16 = vld [vmem:[%s1] sm:$0x1]
  %v17 = vld [vmem:[%s2] sm:$0x1]
  %vm18 = vcmask 261120
  %v19 = vsel %vm18, %v14, 0.0
  %20 = vadd.xlane.f32.xlu0 %v19
  %v21 = vpop.xlane.xlu0 %20
  %v22 = vsel %vm18, %v15, 0.0
  %23 = vadd.xlane.f32.xlu0 %v22
  %v24 = vpop.xlane.xlu0 %23
  %v25 = vrcp.pop 32.0
  %v26 = vmul.f32 32.0, %v25
  %v27 = vsub.f32 1.0, %v26
  %v28 = vmul.f32 %v25, %v27
  %v29 = vadd.f32 %v25, %v28
  %vm30 = vweird.f32 %v25
  %v31 = vsel %vm30, %v25, %v29
  %v32 = vmul.f32 %v21, %v31
  %v33 = vmul.f32 %v24, %v31
  %v34 = vsub.f32 %v14, %v32
  %v35 = vsub.f32 %v15, %v33
  %v36 = vmul.f32 %v34, %v34
  %v37 = vmul.f32 %v35, %v35
  %v38 = vsel %vm18, %v36, 0.0
  %39 = vadd.xlane.f32.xlu0 %v38
  %v40 = vpop.xlane.xlu0 %39
  %v41 = vsel %vm18, %v37, 0.0
  %42 = vadd.xlane.f32.xlu0 %v41
  %v43 = vpop.xlane.xlu0 %42
  %v44 = vmul.f32 %v40, %v31
  %v45 = vmul.f32 %v43, %v31
  %v46 = vadd.f32 %v44, 1e-12
  %v47 = vadd.f32 %v45, 1e-12
  %v48 = vrsqrt.pop %v46
  %v49 = vmul.f32 %v48, %v46
  %v50 = vmul.f32 %v49, %v48
  %v51 = vmul.f32 0.5, %v50
  %v52 = vsub.f32 1.5, %v51
  %v53 = vmul.f32 %v48, %v52
  %vm54 = vweird.f32 %v46
  %vm55 = vweird.f32 %v48
  %vm56 = vmor %vm54, %vm55
  %v57 = vsel %vm56, %v48, %v53
  %v58 = vrsqrt.pop %v47
  %v59 = vmul.f32 %v58, %v47
  %v60 = vmul.f32 %v59, %v58
  %v61 = vmul.f32 0.5, %v60
  %v62 = vsub.f32 1.5, %v61
  %v63 = vmul.f32 %v58, %v62
  %vm64 = vweird.f32 %v47
  %vm65 = vweird.f32 %v58
  %vm66 = vmor %vm64, %vm65
  %v67 = vsel %vm66, %v58, %v63
  %v68 = vmul.f32 %v34, %v57
  %v69 = vmul.f32 %v35, %v67
  %v71 = vperm.slane %v16, 0
  %v73 = vmul.f32 %v68, %v71
  %v74 = vmul.f32 %v69, %v71
  %v76 = vperm.slane %v17, 0
  %v78 = vadd.f32 %v73, %v76
  %v79 = vadd.f32 %v74, %v76
  %80 = vst.msk [vmem:[%s3] sm:$0xff] %vm18, %v78
  %81 = vst.msk [vmem:[%s3 + $0x8] sm:$0xff] %vm18, %v79
  // Predicated region
  $region14: #{bert_masked_lm_forward.4} parent=0 // pred_check
    _
  $region15: #{bert_masked_lm_forward.4} parent=0 // pred_check_branch
    %83 = sbr.rel (0) target = $region17
  $region16: #{bert_masked_lm_forward.4} parent=0 // pred_region
    _
  $region17: #{bert_masked_lm_forward.4} parent=0 // pred_fallthru
    _
  // Predicated region
  $region18: #{bert_masked_lm_forward.4} parent=0 // pred_check
    _
  $region19: #{bert_masked_lm_forward.4} parent=0 // pred_check_branch
    %85 = sbr.rel (0) target = $region21
  $region20: #{bert_masked_lm_forward.4} parent=0 // pred_region
    _
  $region21: #{bert_masked_lm_forward.4} parent=0 // pred_fallthru
    _

// kernel: bert_masked_lm_forward.7
$region0: #{bert_masked_lm_forward.7}
  #allocation0 [shape = 'u32[]', space=smem, size = 0x4, offset = 0x4, fixed_abs, tag = 'smem constant byte address 0x4 - core index']
  #allocation1 [shape = 'u32[72,128]{1,0:T(1,128)}', space=vmem, size = 0x9000, scoped, tag = 'internal scratch']
  %s0 = inlined_call_operand.vmem [shape: f32[16,32], index: 0, kind: input, shape index: {}]
  %s1 = inlined_call_operand.vmem [shape: f32[32,32], index: 1, kind: input, shape index: {}]
  %s2 = inlined_call_operand.vmem [shape: f32[1,32], index: 2, kind: input, shape index: {}]
  %s3 = inlined_call_operand.vmem [shape: f32[1,32], index: 3, kind: input, shape index: {}]
  %s4 = inlined_call_operand.vmem [shape: f32[1,32], index: 4, kind: input, shape index: {}]
  %s5 = inlined_call_operand.vmem [shape: f32[32,128], index: 5, kind: input, shape index: {}]
  %s6 = inlined_call_operand.vmem [shape: f32[1,128], index: 6, kind: input, shape index: {}]
  %s7 = inlined_call_operand.hbm [shape: f32[16,128], index: 7, kind: output, shape index: {}]
  %s8 = sld [smem:[#allocation0]]
  $region38: #{bert_masked_lm_forward.7} parent=0
    _
  %s10 = ssub.s32 1, %s8
  %s11 = scalar_select 0, %s10, %s8
  $region1: #{bert_masked_lm_forward.7} parent=0
    #allocation2 [shape = 'u8[8192]{0}', space=vmem, size = 0x2000, scoped, tag = 'output window, operand 0, single buffered']
    #allocation3 [shape = 's32[1]{0}', space=sflag, size = 0x4, scoped, tag = 'scoped memory for bert_masked_lm_forward.7']
    %12 = vsyncpa [#allocation3], 0
    // Predicated region
    $region2: #{bert_masked_lm_forward.7} parent=1 // pred_check
      _
    $region3: #{bert_masked_lm_forward.7} parent=1 // pred_check_branch
      %14 = sbr.rel (0) target = $region5
    $region4: #{bert_masked_lm_forward.7} parent=1 // pred_region
      _
    $region5: #{bert_masked_lm_forward.7} parent=1 // pred_fallthru
      _
    // Predicated region
    $region6: #{bert_masked_lm_forward.7} parent=1 // pred_check
      _
    $region7: #{bert_masked_lm_forward.7} parent=1 // pred_check_branch
      %16 = sbr.rel (0) target = $region9
    $region8: #{bert_masked_lm_forward.7} parent=1 // pred_region
      _
    $region9: #{bert_masked_lm_forward.7} parent=1 // pred_fallthru
      _
    // Predicated region
    $region10: #{bert_masked_lm_forward.7} parent=1 // pred_check
      _
    $region11: #{bert_masked_lm_forward.7} parent=1 // pred_check_branch
      %18 = sbr.rel (0) target = $region13
    $region12: #{bert_masked_lm_forward.7} parent=1 // pred_region
      _
    $region13: #{bert_masked_lm_forward.7} parent=1 // pred_fallthru
      _
    // Predicated region
    $region14: #{bert_masked_lm_forward.7} parent=1 // pred_check
      _
    $region15: #{bert_masked_lm_forward.7} parent=1 // pred_check_branch
      %20 = sbr.rel (0) target = $region17
    $region16: #{bert_masked_lm_forward.7} parent=1 // pred_region
      _
    $region17: #{bert_masked_lm_forward.7} parent=1 // pred_fallthru
      _
    // Predicated region
    $region18: #{bert_masked_lm_forward.7} parent=1 // pred_check
      _
    $region19: #{bert_masked_lm_forward.7} parent=1 // pred_check_branch
      %22 = sbr.rel (0) target = $region21
    $region20: #{bert_masked_lm_forward.7} parent=1 // pred_region
      _
    $region21: #{bert_masked_lm_forward.7} parent=1 // pred_fallthru
      _
    // Predicated region
    $region22: #{bert_masked_lm_forward.7} parent=1 // pred_check
      _
    $region23: #{bert_masked_lm_forward.7} parent=1 // pred_check_branch
      %24 = sbr.rel (0) target = $region25
    $region24: #{bert_masked_lm_forward.7} parent=1 // pred_region
      _
    $region25: #{bert_masked_lm_forward.7} parent=1 // pred_fallthru
      _
    // Predicated region
    $region26: #{bert_masked_lm_forward.7} parent=1 // pred_check
      _
    $region27: #{bert_masked_lm_forward.7} parent=1 // pred_check_branch
      %26 = sbr.rel (0) target = $region29
    $region28: #{bert_masked_lm_forward.7} parent=1 // pred_region
      _
    $region29: #{bert_masked_lm_forward.7} parent=1 // pred_fallthru
      _
    %v27 = vld [vmem:[%s0] sm:$0xff]
    %v28 = vld [vmem:[%s0 + $0x8] sm:$0xff]
    %v29 = vld [vmem:[%s1] sm:$0xff]
    %v30 = vld [vmem:[%s1 + $0x8] sm:$0xff]
    %v31 = vld [vmem:[%s1 + $0x10] sm:$0xff]
    %v32 = vld [vmem:[%s1 + $0x18] sm:$0xff]
    %v33 = vld [vmem:[%s2] sm:$0x1]
    %v35 = vperm.slane %v33, 0
    %vm37 = vcmask 261120
    %v39 = vsel %vm37, %v27, 0
    %v42 = vsel %vm37, %v28, 0
    %44 = vmatpush.msra.mxu0 0.0
    %45 = vmatpush.msra.mxu0 0.0
    %46 = vmatpush.msra.mxu0 0.0
    %47 = vmatpush.msra.mxu0 0.0
    %48 = vmatpush.msra.mxu0 0.0
    %49 = vmatpush.msra.mxu0 0.0
    %50 = vmatpush.msra.mxu0 0.0
    %51 = vmatpush.msra.mxu0 0.0
    %52 = vmatpush.msra.mxu0 0.0
    %53 = vmatpush.msra.mxu0 0.0
    %54 = vmatpush.msra.mxu0 0.0
    %55 = vmatpush.msra.mxu0 0.0
    %56 = vmatpush.msra.mxu0 %v32
    %57 = vmatpush.msra.mxu0 %v31
    %58 = vmatpush.msra.mxu0 %v30
    %59 = vmatpush.msra.mxu0 %v29
    %60 = vmatmul.f32.gmra.mxu0 %v39
    %v61 = vpop.f32.mrf.mxu0
    %v62 = vadd.f32 %v35, %v61
    %63 = vmatmul.f32.gmra.mxu0 %v42
    %v64 = vpop.f32.mrf.mxu0
    %v65 = vadd.f32 %v35, %v64
    %66 = vdwg.mxu0
    %v67 = vmul.f32 %v62, 0.5
    %v68 = vmul.f32 %v65, 0.5
    %v69 = vmul.f32 %v62, 0.044715
    %v70 = vmul.f32 %v65, 0.044715
    %v71 = vmul.f32 %v69, %v62
    %v72 = vmul.f32 %v70, %v65
    %v73 = vmul.f32 %v71, %v62
    %v74 = vmul.f32 %v72, %v65
    %v75 = vadd.f32 %v62, %v73
    %v76 = vadd.f32 %v65, %v74
    %v77 = vmul.f32 %v75, 0.7978846
    %v78 = vmul.f32 %v76, 0.7978846
    %v79 = vtanh.pop %v77
    %v80 = vtanh.pop %v78
    %v81 = vadd.f32 %v79, 1.0
    %v82 = vadd.f32 %v80, 1.0
    %v83 = vmul.f32 %v67, %v81
    %v84 = vmul.f32 %v68, %v82
    %v85 = vld [vmem:[%s3] sm:$0x1]
    %v86 = vld [vmem:[%s4] sm:$0x1]
    %v87 = vsel %vm37, %v83, 0.0
    %88 = vadd.xlane.f32.xlu0 %v87
    %v89 = vpop.xlane.xlu0 %88
    %v90 = vsel %vm37, %v84, 0.0
    %91 = vadd.xlane.f32.xlu0 %v90
    %v92 = vpop.xlane.xlu0 %91
    %v93 = vrcp.pop 32.0
    %v94 = vmul.f32 32.0, %v93
    %v95 = vsub.f32 1.0, %v94
    %v96 = vmul.f32 %v93, %v95
    %v97 = vadd.f32 %v93, %v96
    %vm98 = vweird.f32 %v93
    %v99 = vsel %vm98, %v93, %v97
    %v100 = vmul.f32 %v89, %v99
    %v101 = vmul.f32 %v92, %v99
    %v102 = vsub.f32 %v83, %v100
    %v103 = vsub.f32 %v84, %v101
    %v104 = vmul.f32 %v102, %v102
    %v105 = vmul.f32 %v103, %v103
    %v106 = vsel %vm37, %v104, 0.0
    %107 = vadd.xlane.f32.xlu0 %v106
    %v108 = vpop.xlane.xlu0 %107
    %v109 = vsel %vm37, %v105, 0.0
    %110 = vadd.xlane.f32.xlu0 %v109
    %v111 = vpop.xlane.xlu0 %110
    %v112 = vmul.f32 %v108, %v99
    %v113 = vmul.f32 %v111, %v99
    %v114 = vadd.f32 %v112, 1e-12
    %v115 = vadd.f32 %v113, 1e-12
    %v116 = vrsqrt.pop %v114
    %v117 = vmul.f32 %v116, %v114
    %v118 = vmul.f32 %v117, %v116
    %v119 = vmul.f32 0.5, %v118
    %v120 = vsub.f32 1.5, %v119
    %v121 = vmul.f32 %v116, %v120
    %vm122 = vweird.f32 %v114
    %vm123 = vweird.f32 %v116
    %vm124 = vmor %vm122, %vm123
    %v125 = vsel %vm124, %v116, %v121
    %v126 = vrsqrt.pop %v115
    %v127 = vmul.f32 %v126, %v115
    %v128 = vmul.f32 %v127, %v126
    %v129 = vmul.f32 0.5, %v128
    %v130 = vsub.f32 1.5, %v129
    %v131 = vmul.f32 %v126, %v130
    %vm132 = vweird.f32 %v115
    %vm133 = vweird.f32 %v126
    %vm134 = vmor %vm132, %vm133
    %v135 = vsel %vm134, %v126, %v131
    %v136 = vmul.f32 %v102, %v125
    %v137 = vmul.f32 %v103, %v135
    %v139 = vperm.slane %v85, 0
    %v141 = vmul.f32 %v136, %v139
    %v142 = vmul.f32 %v137, %v139
    %v144 = vperm.slane %v86, 0
    %v146 = vadd.f32 %v141, %v144
    %v147 = vadd.f32 %v142, %v144
    %v148 = vld [vmem:[%s5] sm:$0xff]
    %v149 = vld [vmem:[%s5 + $0x8] sm:$0xff]
    %v150 = vld [vmem:[%s5 + $0x10] sm:$0xff]
    %v151 = vld [vmem:[%s5 + $0x18] sm:$0xff]
    %v152 = vld [vmem:[%s6] sm:$0x1]
    %v154 = vperm.slane %v152, 0
    %v157 = vsel %vm37, %v146, 0
    %v160 = vsel %vm37, %v147, 0
    %162 = vmatpush.msra.mxu0 0.0
    %163 = vmatpush.msra.mxu0 0.0
    %164 = vmatpush.msra.mxu0 0.0
    %165 = vmatpush.msra.mxu0 0.0
    %166 = vmatpush.msra.mxu0 0.0
    %167 = vmatpush.msra.mxu0 0.0
    %168 = vmatpush.msra.mxu0 0.0
    %169 = vmatpush.msra.mxu0 0.0
    %170 = vmatpush.msra.mxu0 0.0
    %171 = vmatpush.msra.mxu0 0.0
    %172 = vmatpush.msra.mxu0 0.0
    %173 = vmatpush.msra.mxu0 0.0
    %174 = vmatpush.msra.mxu0 %v151
    %175 = vmatpush.msra.mxu0 %v150
    %176 = vmatpush.msra.mxu0 %v149
    %177 = vmatpush.msra.mxu0 %v148
    %178 = vmatmul.f32.gmra.mxu0 %v157
    %v179 = vpop.f32.mrf.mxu0
    %v180 = vadd.f32 %v154, %v179
    %181 = vmatmul.f32.gmra.mxu0 %v160
    %v182 = vpop.f32.mrf.mxu0
    %v183 = vadd.f32 %v154, %v182
    %184 = vdwg.mxu0
    %185 = vst [vmem:[#allocation2] sm:$0xff] %v180
    %186 = vst [vmem:[#allocation2 + $0x8] sm:$0xff] %v183
    // Predicated region
    $region30: #{bert_masked_lm_forward.7} parent=1 // pred_check
      _
    $region31: #{bert_masked_lm_forward.7} parent=1 // pred_check_branch
      %188 = sbr.rel (0) target = $region33
    $region32: #{bert_masked_lm_forward.7} parent=1 // pred_region
      %190 = vsyncadd [#allocation3], 0
      %s191 = sshll.u32 [#allocation2], 4
      %s192 = int_to_ptr.vmem [resolvable:$true] %s191
      %s193 = sshll.u32 %s7, 4
      %s194 = int_to_ptr.hbm [resolvable:$true] %s193
      %199 = dma.vmem_to_hbm [thread:$0]  %s192, 256, %s194, [#allocation3], 128, 128, 8
    $region33: #{bert_masked_lm_forward.7} parent=1 // pred_fallthru
      _
    // Predicated region
    $region34: #{bert_masked_lm_forward.7} parent=1 // pred_check
      _
    $region35: #{bert_masked_lm_forward.7} parent=1 // pred_check_branch
      %201 = sbr.rel (0) target = $region37
    $region36: #{bert_masked_lm_forward.7} parent=1 // pred_region
      %203 = dma.done [#allocation3], 256
    $region37: #{bert_masked_lm_forward.7} parent=1 // pred_fallthru
      _
    %204 = vsyncpa [#allocation3], 1

// kernel: bert_masked_lm_forward.5
$region0: #{bert_masked_lm_forward.5}
  #allocation0 [shape = 'u32[]', space=smem, size = 0x4, offset = 0x4, fixed_abs, tag = 'smem constant byte address 0x4 - core index']
  #allocation1 [shape = 'u32[72,128]{1,0:T(1,128)}', space=vmem, size = 0x9000, scoped, tag = 'internal scratch']
  #allocation2 [shape = 'f32[16,32]{1,0:T(8,128)}', space=vmem, size = 0x2000, scoped, tag = 'scratch operand']
  %s0 = inlined_call_operand.vmem [shape: f32[16,32], index: 0, kind: input, shape index: {}, may-alias: {0,14}]
  %s1 = inlined_call_operand.vmem [shape: f32[2,8], index: 1, kind: input, shape index: {}]
  %s2 = inlined_call_operand.vmem [shape: f32[32,96], index: 2, kind: input, shape index: {}]
  %s3 = inlined_call_operand.vmem [shape: f32[1,96], index: 3, kind: input, shape index: {}]
  %s4 = inlined_call_operand.vmem [shape: f32[32,32], index: 4, kind: input, shape index: {}]
  %s5 = inlined_call_operand.vmem [shape: f32[1,32], index: 5, kind: input, shape index: {}]
  %s6 = inlined_call_operand.vmem [shape: f32[1,32], index: 6, kind: input, shape index: {}]
  %s7 = inlined_call_operand.vmem [shape: f32[1,32], index: 7, kind: input, shape index: {}]
  %s8 = inlined_call_operand.vmem [shape: f32[32,64], index: 8, kind: input, shape index: {}]
  %s9 = inlined_call_operand.vmem [shape: f32[1,64], index: 9, kind: input, shape index: {}]
  %s10 = inlined_call_operand.vmem [shape: f32[64,32], index: 10, kind: input, shape index: {}]
  %s11 = inlined_call_operand.vmem [shape: f32[1,32], index: 11, kind: input, shape index: {}]
  %s12 = inlined_call_operand.vmem [shape: f32[1,32], index: 12, kind: input, shape index: {}]
  %s13 = inlined_call_operand.vmem [shape: f32[1,32], index: 13, kind: input, shape index: {}]
  %s14 = inlined_call_operand.vmem [shape: f32[16,32], index: 14, kind: output, shape index: {}, may-alias: {0,14}]
  %s15 = sld [smem:[#allocation0]]
  $region66: #{bert_masked_lm_forward.5} parent=0
    _
  %s17 = ssub.s32 1, %s15
  %s18 = scalar_select 0, %s17, %s15
  // Predicated region
  $region2: #{bert_masked_lm_forward.5} parent=0 // pred_check
    _
  $region3: #{bert_masked_lm_forward.5} parent=0 // pred_check_branch
    %20 = sbr.rel (0) target = $region5
  $region4: #{bert_masked_lm_forward.5} parent=0 // pred_region
    _
  $region5: #{bert_masked_lm_forward.5} parent=0 // pred_fallthru
    _
  // Predicated region
  $region6: #{bert_masked_lm_forward.5} parent=0 // pred_check
    _
  $region7: #{bert_masked_lm_forward.5} parent=0 // pred_check_branch
    %22 = sbr.rel (0) target = $region9
  $region8: #{bert_masked_lm_forward.5} parent=0 // pred_region
    _
  $region9: #{bert_masked_lm_forward.5} parent=0 // pred_fallthru
    _
  // Predicated region
  $region10: #{bert_masked_lm_forward.5} parent=0 // pred_check
    _
  $region11: #{bert_masked_lm_forward.5} parent=0 // pred_check_branch
    %24 = sbr.rel (0) target = $region13
  $region12: #{bert_masked_lm_forward.5} parent=0 // pred_region
    _
  $region13: #{bert_masked_lm_forward.5} parent=0 // pred_fallthru
    _
  // Predicated region
  $region14: #{bert_masked_lm_forward.5} parent=0 // pred_check
    _
  $region15: #{bert_masked_lm_forward.5} parent=0 // pred_check_branch
    %26 = sbr.rel (0) target = $region17
  $region16: #{bert_masked_lm_forward.5} parent=0 // pred_region
    _
  $region17: #{bert_masked_lm_forward.5} parent=0 // pred_fallthru
    _
  // Predicated region
  $region18: #{bert_masked_lm_forward.5} parent=0 // pred_check
    _
  $region19: #{bert_masked_lm_forward.5} parent=0 // pred_check_branch
    %28 = sbr.rel (0) target = $region21
  $region20: #{bert_masked_lm_forward.5} parent=0 // pred_region
    _
  $region21: #{bert_masked_lm_forward.5} parent=0 // pred_fallthru
    _
  // Predicated region
  $region22: #{bert_masked_lm_forward.5} parent=0 // pred_check
    _
  $region23: #{bert_masked_lm_forward.5} parent=0 // pred_check_branch
    %30 = sbr.rel (0) target = $region25
  $region24: #{bert_masked_lm_forward.5} parent=0 // pred_region
    _
  $region25: #{bert_masked_lm_forward.5} parent=0 // pred_fallthru
    _
  // Predicated region
  $region26: #{bert_masked_lm_forward.5} parent=0 // pred_check
    _
  $region27: #{bert_masked_lm_forward.5} parent=0 // pred_check_branch
    %32 = sbr.rel (0) target = $region29
  $region28: #{bert_masked_lm_forward.5} parent=0 // pred_region
    _
  $region29: #{bert_masked_lm_forward.5} parent=0 // pred_fallthru
    _
  // Predicated region
  $region30: #{bert_masked_lm_forward.5} parent=0 // pred_check
    _
  $region31: #{bert_masked_lm_forward.5} parent=0 // pred_check_branch
    %34 = sbr.rel (0) target = $region33
  $region32: #{bert_masked_lm_forward.5} parent=0 // pred_region
    _
  $region33: #{bert_masked_lm_forward.5} parent=0 // pred_fallthru
    _
  // Predicated region
  $region34: #{bert_masked_lm_forward.5} parent=0 // pred_check
    _
  $region35: #{bert_masked_lm_forward.5} parent=0 // pred_check_branch
    %36 = sbr.rel (0) target = $region37
  $region36: #{bert_masked_lm_forward.5} parent=0 // pred_region
    _
  $region37: #{bert_masked_lm_forward.5} parent=0 // pred_fallthru
    _
  // Predicated region
  $region38: #{bert_masked_lm_forward.5} parent=0 // pred_check
    _
  $region39: #{bert_masked_lm_forward.5} parent=0 // pred_check_branch
    %38 = sbr.rel (0) target = $region41
  $region40: #{bert_masked_lm_forward.5} parent=0 // pred_region
    _
  $region41: #{bert_masked_lm_forward.5} parent=0 // pred_fallthru
    _
  // Predicated region
  $region42: #{bert_masked_lm_forward.5} parent=0 // pred_check
    _
  $region43: #{bert_masked_lm_forward.5} parent=0 // pred_check_branch
    %40 = sbr.rel (0) target = $region45
  $region44: #{bert_masked_lm_forward.5} parent=0 // pred_region
    _
  $region45: #{bert_masked_lm_forward.5} parent=0 // pred_fallthru
    _
  // Predicated region
  $region46: #{bert_masked_lm_forward.5} parent=0 // pred_check
    _
  $region47: #{bert_masked_lm_forward.5} parent=0 // pred_check_branch
    %42 = sbr.rel (0) target = $region49
  $region48: #{bert_masked_lm_forward.5} parent=0 // pred_region
    _
  $region49: #{bert_masked_lm_forward.5} parent=0 // pred_fallthru
    _
  // Predicated region
  $region50: #{bert_masked_lm_forward.5} parent=0 // pred_check
    _
  $region51: #{bert_masked_lm_forward.5} parent=0 // pred_check_branch
    %44 = sbr.rel (0) target = $region53
  $region52: #{bert_masked_lm_forward.5} parent=0 // pred_region
    _
  $region53: #{bert_masked_lm_forward.5} parent=0 // pred_fallthru
    _
  // Predicated region
  $region54: #{bert_masked_lm_forward.5} parent=0 // pred_check
    _
  $region55: #{bert_masked_lm_forward.5} parent=0 // pred_check_branch
    %46 = sbr.rel (0) target = $region57
  $region56: #{bert_masked_lm_forward.5} parent=0 // pred_region
    _
  $region57: #{bert_masked_lm_forward.5} parent=0 // pred_fallthru
    _
  %v47 = vld [vmem:[%s0] sm:$0xff]
  %v48 = vld [vmem:[%s0 + $0x8] sm:$0xff]
  %v49 = vld [vmem:[%s2] sm:$0xff]
  %v50 = vld [vmem:[%s2 + $0x8] sm:$0xff]
  %v51 = vld [vmem:[%s2 + $0x10] sm:$0xff]
  %v52 = vld [vmem:[%s2 + $0x18] sm:$0xff]
  %v53 = vld [vmem:[%s3] sm:$0x1]
  %v55 = vperm.slane %v53, 0
  %vm57 = vcmask 261120
  %v59 = vsel %vm57, %v47, 0
  %v62 = vsel %vm57, %v48, 0
  %64 = vmatpush.msra.mxu0 0.0
  %65 = vmatpush.msra.mxu0 0.0
  %66 = vmatpush.msra.mxu0 0.0
  %67 = vmatpush.msra.mxu0 0.0
  %68 = vmatpush.msra.mxu0 0.0
  %69 = vmatpush.msra.mxu0 0.0
  %70 = vmatpush.msra.mxu0 0.0
  %71 = vmatpush.msra.mxu0 0.0
  %72 = vmatpush.msra.mxu0 0.0
  %73 = vmatpush.msra.mxu0 0.0
  %74 = vmatpush.msra.mxu0 0.0
  %75 = vmatpush.msra.mxu0 0.0
  %76 = vmatpush.msra.mxu0 %v52
  %77 = vmatpush.msra.mxu0 %v51
  %78 = vmatpush.msra.mxu0 %v50
  %79 = vmatpush.msra.mxu0 %v49
  %80 = vmatmul.f32.gmra.mxu0 %v59
  %v81 = vpop.f32.mrf.mxu0
  %v82 = vadd.f32 %v55, %v81
  %83 = vmatmul.f32.gmra.mxu0 %v62
  %v84 = vpop.f32.mrf.mxu0
  %v85 = vadd.f32 %v55, %v84
  %86 = vdwg.mxu0
  %v87 = vld [vmem:[%s1] sm:$0x1]
  %89 = vrot.lane.b32.xlu0 %v82, 96
  %v90 = vpop.permute.xlu0 %89
  %vm91 = vcmask 130048
  %v92 = vsel %vm91, %v82, 0
  %v94 = vsel %vm91, %v90, 0
  %96 = vmatpush.xpose.msra.mxu0 0.0
  %97 = vmatpush.xpose.msra.mxu0 0.0
  %98 = vmatpush.xpose.msra.mxu0 0.0
  %99 = vmatpush.xpose.msra.mxu0 0.0
  %100 = vmatpush.xpose.msra.mxu0 0.0
  %101 = vmatpush.xpose.msra.mxu0 0.0
  %102 = vmatpush.xpose.msra.mxu0 0.0
  %103 = vmatpush.xpose.msra.mxu0 0.0
  %104 = vmatpush.xpose.msra.mxu0 0.0
  %105 = vmatpush.xpose.msra.mxu0 0.0
  %106 = vmatpush.xpose.msra.mxu0 0.0
  %107 = vmatpush.xpose.msra.mxu0 0.0
  %108 = vmatpush.xpose.msra.mxu0 0.0
  %109 = vmatpush.xpose.msra.mxu0 0.0
  %110 = vmatpush.xpose.msra.mxu0 0.0
  %111 = vmatpush.xpose.msra.mxu0 %v94
  %112 = vmatmul.f32.gmra.mxu0 %v92
  %v113 = vpop.f32.mrf.mxu0
  %v114 = vadd.f32 0.0, %v113
  %115 = vdwg.mxu0
  %v116 = vmul.f32 %v114, 0.25
  %v117 = vperm.slane %v87, 0
  %v118 = vadd.f32 %v116, %v117
  %vm119 = vcmask 64512
  %v120 = vsel %vm119, %v118, -inf
  %121 = vmax.xlane.f32.xlu0 %v120
  %v122 = vpop.xlane.xlu0 %121
  %v123 = vsub.f32 %v118, %v122
  %v124 = vmul.f32 %v123, 1.442695
  %v125 = vpow.pop %v124
  %v126 = vsel %vm119, %v125, 0.0
  %127 = vadd.xlane.f32.xlu0 %v126
  %v128 = vpop.xlane.xlu0 %127
  %v129 = vrcp.pop %v128
  %v130 = vmul.f32 %v125, %v129
  %131 = vrot.lane.b32.xlu0 %v82, 64
  %v132 = vpop.permute.xlu0 %131
  %v135 = vsel %vm119, %v130, 0
  %137 = vmatpush.msra.mxu0 0.0
  %138 = vmatpush.msra.mxu0 0.0
  %139 = vmatpush.msra.mxu0 0.0
  %140 = vmatpush.msra.mxu0 0.0
  %141 = vmatpush.msra.mxu0 0.0
  %142 = vmatpush.msra.mxu0 0.0
  %143 = vmatpush.msra.mxu0 0.0
  %144 = vmatpush.msra.mxu0 0.0
  %145 = vmatpush.msra.mxu0 0.0
  %146 = vmatpush.msra.mxu0 0.0
  %147 = vmatpush.msra.mxu0 0.0
  %148 = vmatpush.msra.mxu0 0.0
  %149 = vmatpush.msra.mxu0 0.0
  %150 = vmatpush.msra.mxu0 0.0
  %151 = vmatpush.msra.mxu0 0.0
  %152 = vmatpush.msra.mxu0 %v132
  %153 = vmatmul.f32.gmra.mxu0 %v135
  %v154 = vpop.f32.mrf.mxu0
  %v155 = vadd.f32 0.0, %v154
  %156 = vdwg.mxu0
  %157 = vst.msk [vmem:[#allocation2] sm:$0xff] %vm91, %v155
  %158 = vrot.lane.b32.xlu0 %v82, 112
  %v159 = vpop.permute.xlu0 %158
  %160 = vrot.lane.b32.xlu0 %v82, 80
  %v161 = vpop.permute.xlu0 %160
  %v162 = vsel %vm91, %v159, 0
  %v164 = vsel %vm91, %v161, 0
  %166 = vmatpush.xpose.msra.mxu0 0.0
  %167 = vmatpush.xpose.msra.mxu0 0.0
  %168 = vmatpush.xpose.msra.mxu0 0.0
  %169 = vmatpush.xpose.msra.mxu0 0.0
  %170 = vmatpush.xpose.msra.mxu0 0.0
  %171 = vmatpush.xpose.msra.mxu0 0.0
  %172 = vmatpush.xpose.msra.mxu0 0.0
  %173 = vmatpush.xpose.msra.mxu0 0.0
  %174 = vmatpush.xpose.msra.mxu0 0.0
  %175 = vmatpush.xpose.msra.mxu0 0.0
  %176 = vmatpush.xpose.msra.mxu0 0.0
  %177 = vmatpush.xpose.msra.mxu0 0.0
  %178 = vmatpush.xpose.msra.mxu0 0.0
  %179 = vmatpush.xpose.msra.mxu0 0.0
  %180 = vmatpush.xpose.msra.mxu0 0.0
  %181 = vmatpush.xpose.msra.mxu0 %v164
  %182 = vmatmul.f32.gmra.mxu0 %v162
  %v183 = vpop.f32.mrf.mxu0
  %v184 = vadd.f32 0.0, %v183
  %185 = vdwg.mxu0
  %v186 = vmul.f32 %v184, 0.25
  %v187 = vadd.f32 %v186, %v117
  %v188 = vsel %vm119, %v187, -inf
  %189 = vmax.xlane.f32.xlu0 %v188
  %v190 = vpop.xlane.xlu0 %189
  %v191 = vsub.f32 %v187, %v190
  %v192 = vmul.f32 %v191, 1.442695
  %v193 = vpow.pop %v192
  %v194 = vsel %vm119, %v193, 0.0
  %195 = vadd.xlane.f32.xlu0 %v194
  %v196 = vpop.xlane.xlu0 %195
  %v197 = vrcp.pop %v196
  %v198 = vmul.f32 %v193, %v197
  %199 = vrot.lane.b32.xlu0 %v82, 48
  %v200 = vpop.permute.xlu0 %199
  %v203 = vsel %vm119, %v198, 0
  %205 = vmatpush.msra.mxu0 0.0
  %206 = vmatpush.msra.mxu0 0.0
  %207 = vmatpush.msra.mxu0 0.0
  %208 = vmatpush.msra.mxu0 0.0
  %209 = vmatpush.msra.mxu0 0.0
  %210 = vmatpush.msra.mxu0 0.0
  %211 = vmatpush.msra.mxu0 0.0
  %212 = vmatpush.msra.mxu0 0.0
  %213 = vmatpush.msra.mxu0 0.0
  %214 = vmatpush.msra.mxu0 0.0
  %215 = vmatpush.msra.mxu0 0.0
  %216 = vmatpush.msra.mxu0 0.0
  %217 = vmatpush.msra.mxu0 0.0
  %218 = vmatpush.msra.mxu0 0.0
  %219 = vmatpush.msra.mxu0 0.0
  %220 = vmatpush.msra.mxu0 %v200
  %221 = vmatmul.f32.gmra.mxu0 %v203
  %v222 = vpop.f32.mrf.mxu0
  %v223 = vadd.f32 0.0, %v222
  %224 = vdwg.mxu0
  %226 = vrot.lane.b32.xlu0 %v223, 16
  %v227 = vpop.permute.xlu0 %226
  %vm229 = vcmask 261248
  %230 = vst.msk [vmem:[#allocation2] sm:$0xff] %vm229, %v227
  %v231 = vld [vmem:[%s1 + $0x1] sm:$0x1]
  %233 = vrot.lane.b32.xlu0 %v85, 96
  %v234 = vpop.permute.xlu0 %233
  %v235 = vsel %vm91, %v85, 0
  %v237 = vsel %vm91, %v234, 0
  %239 = vmatpush.xpose.msra.mxu0 0.0
  %240 = vmatpush.xpose.msra.mxu0 0.0
  %241 = vmatpush.xpose.msra.mxu0 0.0
  %242 = vmatpush.xpose.msra.mxu0 0.0
  %243 = vmatpush.xpose.msra.mxu0 0.0
  %244 = vmatpush.xpose.msra.mxu0 0.0
  %245 = vmatpush.xpose.msra.mxu0 0.0
  %246 = vmatpush.xpose.msra.mxu0 0.0
  %247 = vmatpush.xpose.msra.mxu0 0.0
  %248 = vmatpush.xpose.msra.mxu0 0.0
  %249 = vmatpush.xpose.msra.mxu0 0.0
  %250 = vmatpush.xpose.msra.mxu0 0.0
  %251 = vmatpush.xpose.msra.mxu0 0.0
  %252 = vmatpush.xpose.msra.mxu0 0.0
  %253 = vmatpush.xpose.msra.mxu0 0.0
  %254 = vmatpush.xpose.msra.mxu0 %v237
  %255 = vmatmul.f32.gmra.mxu0 %v235
  %v256 = vpop.f32.mrf.mxu0
  %v257 = vadd.f32 0.0, %v256
  %258 = vdwg.mxu0
  %v259 = vmul.f32 %v257, 0.25
  %v260 = vperm.slane %v231, 0
  %v261 = vadd.f32 %v259, %v260
  %v262 = vsel %vm119, %v261, -inf
  %263 = vmax.xlane.f32.xlu0 %v262
  %v264 = vpop.xlane.xlu0 %263
  %v265 = vsub.f32 %v261, %v264
  %v266 = vmul.f32 %v265, 1.442695
  %v267 = vpow.pop %v266
  %v268 = vsel %vm119, %v267, 0.0
  %269 = vadd.xlane.f32.xlu0 %v268
  %v270 = vpop.xlane.xlu0 %269
  %v271 = vrcp.pop %v270
  %v272 = vmul.f32 %v267, %v271
  %273 = vrot.lane.b32.xlu0 %v85, 64
  %v274 = vpop.permute.xlu0 %273
  %v277 = vsel %vm119, %v272, 0
  %279 = vmatpush.msra.mxu0 0.0
  %280 = vmatpush.msra.mxu0 0.0
  %281 = vmatpush.msra.mxu0 0.0
  %282 = vmatpush.msra.mxu0 0.0
  %283 = vmatpush.msra.mxu0 0.0
  %284 = vmatpush.msra.mxu0 0.0
  %285 = vmatpush.msra.mxu0 0.0
  %286 = vmatpush.msra.mxu0 0.0
  %287 = vmatpush.msra.mxu0 0.0
  %288 = vmatpush.msra.mxu0 0.0
  %289 = vmatpush.msra.mxu0 0.0
  %290 = vmatpush.msra.mxu0 0.0
  %291 = vmatpush.msra.mxu0 0.0
  %292 = vmatpush.msra.mxu0 0.0
  %293 = vmatpush.msra.mxu0 0.0
  %294 = vmatpush.msra.mxu0 %v274
  %295 = vmatmul.f32.gmra.mxu0 %v277
  %v296 = vpop.f32.mrf.mxu0
  %v297 = vadd.f32 0.0, %v296
  %298 = vdwg.mxu0
  %299 = vst.msk [vmem:[#allocation2 + $0x8] sm:$0xff] %vm91, %v297
  %300 = vrot.lane.b32.xlu0 %v85, 112
  %v301 = vpop.permute.xlu0 %300
  %302 = vrot.lane.b32.xlu0 %v85, 80
  %v303 = vpop.permute.xlu0 %302
  %v304 = vsel %vm91, %v301, 0
  %v306 = vsel %vm91, %v303, 0
  %308 = vmatpush.xpose.msra.mxu0 0.0
  %309 = vmatpush.xpose.msra.mxu0 0.0
  %310 = vmatpush.xpose.msra.mxu0 0.0
  %311 = vmatpush.xpose.msra.mxu0 0.0
  %312 = vmatpush.xpose.msra.mxu0 0.0
  %313 = vmatpush.xpose.msra.mxu0 0.0
  %314 = vmatpush.xpose.msra.mxu0 0.0
  %315 = vmatpush.xpose.msra.mxu0 0.0
  %316 = vmatpush.xpose.msra.mxu0 0.0
  %317 = vmatpush.xpose.msra.mxu0 0.0
  %318 = vmatpush.xpose.msra.mxu0 0.0
  %319 = vmatpush.xpose.msra.mxu0 0.0
  %320 = vmatpush.xpose.msra.mxu0 0.0
  %321 = vmatpush.xpose.msra.mxu0 0.0
  %322 = vmatpush.xpose.msra.mxu0 0.0
  %323 = vmatpush.xpose.msra.mxu0 %v306
  %324 = vmatmul.f32.gmra.mxu0 %v304
  %v325 = vpop.f32.mrf.mxu0
  %v326 = vadd.f32 0.0, %v325
  %327 = vdwg.mxu0
  %v328 = vmul.f32 %v326, 0.25
  %v329 = vadd.f32 %v328, %v260
  %v330 = vsel %vm119, %v329, -inf
  %331 = vmax.xlane.f32.xlu0 %v330
  %v332 = vpop.xlane.xlu0 %331
  %v333 = vsub.f32 %v329, %v332
  %v334 = vmul.f32 %v333, 1.442695
  %v335 = vpow.pop %v334
  %v336 = vsel %vm119, %v335, 0.0
  %337 = vadd.xlane.f32.xlu0 %v336
  %v338 = vpop.xlane.xlu0 %337
  %v339 = vrcp.pop %v338
  %v340 = vmul.f32 %v335, %v339
  %341 = vrot.lane.b32.xlu0 %v85, 48
  %v342 = vpop.permute.xlu0 %341
  %v345 = vsel %vm119, %v340, 0
  %347 = vmatpush.msra.mxu0 0.0
  %348 = vmatpush.msra.mxu0 0.0
  %349 = vmatpush.msra.mxu0 0.0
  %350 = vmatpush.msra.mxu0 0.0
  %351 = vmatpush.msra.mxu0 0.0
  %352 = vmatpush.msra.mxu0 0.0
  %353 = vmatpush.msra.mxu0 0.0
  %354 = vmatpush.msra.mxu0 0.0
  %355 = vmatpush.msra.mxu0 0.0
  %356 = vmatpush.msra.mxu0 0.0
  %357 = vmatpush.msra.mxu0 0.0
  %358 = vmatpush.msra.mxu0 0.0
  %359 = vmatpush.msra.mxu0 0.0
  %360 = vmatpush.msra.mxu0 0.0
  %361 = vmatpush.msra.mxu0 0.0
  %362 = vmatpush.msra.mxu0 %v342
  %363 = vmatmul.f32.gmra.mxu0 %v345
  %v364 = vpop.f32.mrf.mxu0
  %v365 = vadd.f32 0.0, %v364
  %366 = vdwg.mxu0
  %368 = vrot.lane.b32.xlu0 %v365, 16
  %v369 = vpop.permute.xlu0 %368
  %371 = vst.msk [vmem:[#allocation2 + $0x8] sm:$0xff] %vm229, %v369
  %v372 = vld [vmem:[#allocation2] sm:$0xff]
  %v373 = vld [vmem:[#allocation2 + $0x8] sm:$0xff]
  %v374 = vld [vmem:[%s4] sm:$0xff]
  %v375 = vld [vmem:[%s4 + $0x8] sm:$0xff]
  %v376 = vld [vmem:[%s4 + $0x10] sm:$0xff]
  %v377 = vld [vmem:[%s4 + $0x18] sm:$0xff]
  %v378 = vld [vmem:[%s5] sm:$0x1]
  %v380 = vperm.slane %v378, 0
  %v383 = vsel %vm57, %v372, 0
  %v386 = vsel %vm57, %v373, 0
  %388 = vmatpush.msra.mxu0 0.0
  %389 = vmatpush.msra.mxu0 0.0
  %390 = vmatpush.msra.mxu0 0.0
  %391 = vmatpush.msra.mxu0 0.0
  %392 = vmatpush.msra.mxu0 0.0
  %393 = vmatpush.msra.mxu0 0.0
  %394 = vmatpush.msra.mxu0 0.0
  %395 = vmatpush.msra.mxu0 0.0
  %396 = vmatpush.msra.mxu0 0.0
  %397 = vmatpush.msra.mxu0 0.0
  %398 = vmatpush.msra.mxu0 0.0
  %399 = vmatpush.msra.mxu0 0.0
  %400 = vmatpush.msra.mxu0 %v377
  %401 = vmatpush.msra.mxu0 %v376
  %402 = vmatpush.msra.mxu0 %v375
  %403 = vmatpush.msra.mxu0 %v374
  %404 = vmatmul.f32.gmra.mxu0 %v383
  %v405 = vpop.f32.mrf.mxu0
  %v406 = vadd.f32 %v380, %v405
  %407 = vmatmul.f32.gmra.mxu0 %v386
  %v408 = vpop.f32.mrf.mxu0
  %v409 = vadd.f32 %v380, %v408
  %410 = vdwg.mxu0
  %v411 = vadd.f32 %v406, %v47
  %v412 = vadd.f32 %v409, %v48
  %v413 = vld [vmem:[%s6] sm:$0x1]
  %v414 = vld [vmem:[%s7] sm:$0x1]
  %v415 = vsel %vm57, %v411, 0.0
  %416 = vadd.xlane.f32.xlu0 %v415
  %v417 = vpop.xlane.xlu0 %416
  %v418 = vsel %vm57, %v412, 0.0
  %419 = vadd.xlane.f32.xlu0 %v418
  %v420 = vpop.xlane.xlu0 %419
  %v421 = vrcp.pop 32.0
  %v422 = vmul.f32 32.0, %v421
  %v423 = vsub.f32 1.0, %v422
  %v424 = vmul.f32 %v421, %v423
  %v425 = vadd.f32 %v421, %v424
  %vm426 = vweird.f32 %v421
  %v427 = vsel %vm426, %v421, %v425
  %v428 = vmul.f32 %v417, %v427
  %v429 = vmul.f32 %v420, %v427
  %v430 = vsub.f32 %v411, %v428
  %v431 = vsub.f32 %v412, %v429
  %v432 = vmul.f32 %v430, %v430
  %v433 = vmul.f32 %v431, %v431
  %v434 = vsel %vm57, %v432, 0.0
  %435 = vadd.xlane.f32.xlu0 %v434
  %v436 = vpop.xlane.xlu0 %435
  %v437 = vsel %vm57, %v433, 0.0
  %438 = vadd.xlane.f32.xlu0 %v437
  %v439 = vpop.xlane.xlu0 %438
  %v440 = vmul.f32 %v436, %v427
  %v441 = vmul.f32 %v439, %v427
  %v442 = vadd.f32 %v440, 1e-12
  %v443 = vadd.f32 %v441, 1e-12
  %v444 = vrsqrt.pop %v442
  %v445 = vmul.f32 %v444, %v442
  %v446 = vmul.f32 %v445, %v444
  %v447 = vmul.f32 0.5, %v446
  %v448 = vsub.f32 1.5, %v447
  %v449 = vmul.f32 %v444, %v448
  %vm450 = vweird.f32 %v442
  %vm451 = vweird.f32 %v444
  %vm452 = vmor %vm450, %vm451
  %v453 = vsel %vm452, %v444, %v449
  %v454 = vrsqrt.pop %v443
  %v455 = vmul.f32 %v454, %v443
  %v456 = vmul.f32 %v455, %v454
  %v457 = vmul.f32 0.5, %v456
  %v458 = vsub.f32 1.5, %v457
  %v459 = vmul.f32 %v454, %v458
  %vm460 = vweird.f32 %v443
  %vm461 = vweird.f32 %v454
  %vm462 = vmor %vm460, %vm461
  %v463 = vsel %vm462, %v454, %v459
  %v464 = vmul.f32 %v430, %v453
  %v465 = vmul.f32 %v431, %v463
  %v467 = vperm.slane %v413, 0
  %v469 = vmul.f32 %v464, %v467
  %v470 = vmul.f32 %v465, %v467
  %v472 = vperm.slane %v414, 0
  %v474 = vadd.f32 %v469, %v472
  %v475 = vadd.f32 %v470, %v472
  %v476 = vld [vmem:[%s8] sm:$0xff]
  %v477 = vld [vmem:[%s8 + $0x8] sm:$0xff]
  %v478 = vld [vmem:[%s8 + $0x10] sm:$0xff]
  %v479 = vld [vmem:[%s8 + $0x18] sm:$0xff]
  %v480 = vld [vmem:[%s9] sm:$0x1]
  %v482 = vperm.slane %v480, 0
  %v485 = vsel %vm57, %v474, 0
  %v488 = vsel %vm57, %v475, 0
  %490 = vmatpush.msra.mxu0 0.0
  %491 = vmatpush.msra.mxu0 0.0
  %492 = vmatpush.msra.mxu0 0.0
  %493 = vmatpush.msra.mxu0 0.0
  %494 = vmatpush.msra.mxu0 0.0
  %495 = vmatpush.msra.mxu0 0.0
  %496 = vmatpush.msra.mxu0 0.0
  %497 = vmatpush.msra.mxu0 0.0
  %498 = vmatpush.msra.mxu0 0.0
  %499 = vmatpush.msra.mxu0 0.0
  %500 = vmatpush.msra.mxu0 0.0
  %501 = vmatpush.msra.mxu0 0.0
  %502 = vmatpush.msra.mxu0 %v479
  %503 = vmatpush.msra.mxu0 %v478
  %504 = vmatpush.msra.mxu0 %v477
  %505 = vmatpush.msra.mxu0 %v476
  %506 = vmatmul.f32.gmra.mxu0 %v485
  %v507 = vpop.f32.mrf.mxu0
  %v508 = vadd.f32 %v482, %v507
  %509 = vmatmul.f32.gmra.mxu0 %v488
  %v510 = vpop.f32.mrf.mxu0
  %v511 = vadd.f32 %v482, %v510
  %512 = vdwg.mxu0
  %v513 = vmul.f32 %v508, 0.5
  %v514 = vmul.f32 %v511, 0.5
  %v515 = vmul.f32 %v508, 0.044715
  %v516 = vmul.f32 %v511, 0.044715
  %v517 = vmul.f32 %v515, %v508
  %v518 = vmul.f32 %v516, %v511
  %v519 = vmul.f32 %v517, %v508
  %v520 = vmul.f32 %v518, %v511
  %v521 = vadd.f32 %v508, %v519
  %v522 = vadd.f32 %v511, %v520
  %v523 = vmul.f32 %v521, 0.7978846
  %v524 = vmul.f32 %v522, 0.7978846
  %v525 = vtanh.pop %v523
  %v526 = vtanh.pop %v524
  %v527 = vadd.f32 %v525, 1.0
  %v528 = vadd.f32 %v526, 1.0
  %v529 = vmul.f32 %v513, %v527
  %v530 = vmul.f32 %v514, %v528
  %v531 = vld [vmem:[%s10] sm:$0xff]
  %v532 = vld [vmem:[%s10 + $0x8] sm:$0xff]
  %v533 = vld [vmem:[%s10 + $0x10] sm:$0xff]
  %v534 = vld [vmem:[%s10 + $0x18] sm:$0xff]
  %v535 = vld [vmem:[%s10 + $0x20] sm:$0xff]
  %v536 = vld [vmem:[%s10 + $0x28] sm:$0xff]
  %v537 = vld [vmem:[%s10 + $0x30] sm:$0xff]
  %v538 = vld [vmem:[%s10 + $0x38] sm:$0xff]
  %v539 = vld [vmem:[%s11] sm:$0x1]
  %v541 = vperm.slane %v539, 0
  %vm543 = vcmask 523264
  %v545 = vsel %vm543, %v529, 0
  %v548 = vsel %vm543, %v530, 0
  %550 = vmatpush.msra.mxu0 0.0
  %551 = vmatpush.msra.mxu0 0.0
  %552 = vmatpush.msra.mxu0 0.0
  %553 = vmatpush.msra.mxu0 0.0
  %554 = vmatpush.msra.mxu0 0.0
  %555 = vmatpush.msra.mxu0 0.0
  %556 = vmatpush.msra.mxu0 0.0
  %557 = vmatpush.msra.mxu0 0.0
  %558 = vmatpush.msra.mxu0 %v538
  %559 = vmatpush.msra.mxu0 %v537
  %560 = vmatpush.msra.mxu0 %v536
  %561 = vmatpush.msra.mxu0 %v535
  %562 = vmatpush.msra.mxu0 %v534
  %563 = vmatpush.msra.mxu0 %v533
  %564 = vmatpush.msra.mxu0 %v532
  %565 = vmatpush.msra.mxu0 %v531
  %566 = vmatmul.f32.gmra.mxu0 %v545
  %v567 = vpop.f32.mrf.mxu0
  %v568 = vadd.f32 %v541, %v567
  %569 = vmatmul.f32.gmra.mxu0 %v548
  %v570 = vpop.f32.mrf.mxu0
  %v571 = vadd.f32 %v541, %v570
  %572 = vdwg.mxu0
  %v573 = vadd.f32 %v568, %v474
  %v574 = vadd.f32 %v571, %v475
  %v575 = vld [vmem:[%s12] sm:$0x1]
  %v576 = vld [vmem:[%s13] sm:$0x1]
  %v577 = vsel %vm57, %v573, 0.0
  %578 = vadd.xlane.f32.xlu0 %v577
  %v579 = vpop.xlane.xlu0 %578
  %v580 = vsel %vm57, %v574, 0.0
  %581 = vadd.xlane.f32.xlu0 %v580
  %v582 = vpop.xlane.xlu0 %581
  %v583 = vmul.f32 %v579, %v427
  %v584 = vmul.f32 %v582, %v427
  %v585 = vsub.f32 %v573, %v583
  %v586 = vsub.f32 %v574, %v584
  %v587 = vmul.f32 %v585, %v585
  %v588 = vmul.f32 %v586, %v586
  %v589 = vsel %vm57, %v587, 0.0
  %590 = vadd.xlane.f32.xlu0 %v589
  %v591 = vpop.xlane.xlu0 %590
  %v592 = vsel %vm57, %v588, 0.0
  %593 = vadd.xlane.f32.xlu0 %v592
  %v594 = vpop.xlane.xlu0 %593
  %v595 = vmul.f32 %v591, %v427
  %v596 = vmul.f32 %v594, %v427
  %v597 = vadd.f32 %v595, 1e-12
  %v598 = vadd.f32 %v596, 1e-12
  %v599 = vrsqrt.pop %v597
  %v600 = vmul.f32 %v599, %v597
  %v601 = vmul.f32 %v600, %v599
  %v602 = vmul.f32 0.5, %v601
  %v603 = vsub.f32 1.5, %v602
  %v604 = vmul.f32 %v599, %v603
  %vm605 = vweird.f32 %v597
  %vm606 = vweird.f32 %v599
  %vm607 = vmor %vm605, %vm606
  %v608 = vsel %vm607, %v599, %v604
  %v609 = vrsqrt.pop %v598
  %v610 = vmul.f32 %v609, %v598
  %v611 = vmul.f32 %v610, %v609
  %v612 = vmul.f32 0.5, %v611
  %v613 = vsub.f32 1.5, %v612
  %v614 = vmul.f32 %v609, %v613
  %vm615 = vweird.f32 %v598
  %vm616 = vweird.f32 %v609
  %vm617 = vmor %vm615, %vm616
  %v618 = vsel %vm617, %v609, %v614
  %v619 = vmul.f32 %v585, %v608
  %v620 = vmul.f32 %v586, %v618
  %v622 = vperm.slane %v575, 0
  %v624 = vmul.f32 %v619, %v622
  %v625 = vmul.f32 %v620, %v622
  %v627 = vperm.slane %v576, 0
  %v629 = vadd.f32 %v624, %v627
  %v630 = vadd.f32 %v625, %v627
  %631 = vst.msk [vmem:[%s14] sm:$0xff] %vm57, %v629
  %632 = vst.msk [vmem:[%s14 + $0x8] sm:$0xff] %vm57, %v630
  // Predicated region
  $region58: #{bert_masked_lm_forward.5} parent=0 // pred_check
    _
  $region59: #{bert_masked_lm_forward.5} parent=0 // pred_check_branch
    %634 = sbr.rel (0) target = $region61
  $region60: #{bert_masked_lm_forward.5} parent=0 // pred_region
    _
  $region61: #{bert_masked_lm_forward.5} parent=0 // pred_fallthru
    _
  // Predicated region
  $region62: #{bert_masked_lm_forward.5} parent=0 // pred_check
    _
  $region63: #{bert_masked_lm_forward.5} parent=0 // pred_check_branch
    %636 = sbr.rel (0) target = $region65
  $region64: #{bert_masked_lm_forward.5} parent=0 // pred_region
    _
  $region65: #{bert_masked_lm_forward.5} parent=0 // pred_fallthru
    _

</llo_original>
